<compile_context>
chip_gen: v7x
topology: tpu7x:2x2x1
jax: 0.10.0
libtpu: 0.0.40
codegen_flags: <defaults>
</compile_context>

<pallas_src>
import numpy as np
import jax
import jax.numpy as jnp
from jax import lax
from jax.experimental import pallas as pl
from jax.experimental.pallas import tpu as pltpu

LANE = 128
SUBLANE = 8


def _round_up(v, m):
    return ((v + m - 1) // m) * m


# ------------------- kernel 1: fused neighbour aggregation + line + ReLU (tiled over dst nodes) -----

def _mp_kernel(a_ref, xw_ref, xsl_ref, lb_ref, feats_ref):
    """feats_tile = relu(A_flat_tile @ XW_stack + xsl_tile + line_b).

    a_ref   : (tm, R*Np)  bf16   A[r, d, s] laid out as A_flat[d, r*Np + s]   (pipelined per tile)
    xw_ref  : (R*Np, Dop) bf16   row r*Np+s = x[s] @ (W[r] @ line_W.T)        (VMEM-resident)
    xsl_ref : (tm, Dop)   f32    x_dst @ (self_loop_W @ line_W.T)             (pipelined per tile)
    lb_ref  : (1, Dop)    f32    line bias                                    (VMEM-resident)
    """
    agg = jnp.dot(a_ref[...], xw_ref[...], preferred_element_type=jnp.float32)
    feats_ref[...] = jnp.maximum(agg + xsl_ref[...] + lb_ref[...], 0.0)


# ------------------- kernel 2: batched per-graph path attention (single grid step) ------------------

def _epilogue_kernel(tar_ref, feats_ref, sel_ref, zpath_ref, path_out_ref):
    """Row-wise masked softmax attention of each graph's path nodes against its target relation."""
    tar = tar_ref[...]                    # (Bp, Dop) gathered target-relation embeddings
    feats = feats_ref[...]                # (Np, Dop)
    sel = sel_ref[...]                    # (Bp, Np)  graph_onehot * path_mask
    mask = sel > 0.0

    # scores[b, n] = tar[b] . feats[n]  (contract last dims, no feats.T materialised)
    scores = lax.dot_general(tar, feats, (((1,), (1,)), ((), ())),
                             preferred_element_type=jnp.float32)      # (Bp, Np)
    masked = jnp.where(mask, scores, jnp.float32(-1e30))
    m = jnp.max(masked, axis=1, keepdims=True)
    e = jnp.where(mask, jnp.exp(masked - m), 0.0)
    l = jnp.sum(e, axis=1, keepdims=True)
    w = e * pl.reciprocal(jnp.where(l > 0.0, l, 1.0), approx=True)    # EUP reciprocal (free slot)
    p = jnp.dot(w, feats, preferred_element_type=jnp.float32)         # (Bp, Dop)

    has_path = jnp.sum(sel, axis=1, keepdims=True) > 0.0
    path_out_ref[...] = jnp.where(has_path, p, zpath_ref[...])        # zero_path fallback


# --------------------------------------- host-side helpers ---------------------------------------

def pack_adjacency(A, num_nodes_padded):
    """One-time (per graph batch) repack: A[r, dst, src] -> A_flat_bf16[dst, r*Np + src].

    Call this ONCE when the graph batch is built, not per forward pass.
    """
    R, N, _ = A.shape
    Np = int(num_nodes_padded)
    A_p = jnp.zeros((R, Np, Np), jnp.float32).at[:, :N, :N].set(A.astype(jnp.float32))
    return jnp.transpose(A_p, (1, 0, 2)).reshape(Np, R * Np).astype(jnp.bfloat16)


def _pick_tm(Np, R, tm_req, vmem_budget_bytes, bytes_a=2, dop=LANE):
    """Largest 128-multiple divisor of Np that is <= tm_req and fits the VMEM working-set budget."""
    n_lanes = Np // LANE
    t = max(1, min(tm_req, Np) // LANE)
    while n_lanes % t:
        t -= 1

    def ws_bytes(tb):
        tm = tb * LANE
        resident = 2 * (R * Np * dop * 2) + 2 * (dop * 4)            # XW_stack (bf16) + bias
        per_tile = 2 * (tm * R * Np * bytes_a) + 2 * (tm * dop * 4) + 2 * (tm * dop * 4)
        return resident + per_tile                                    # 2x = double-buffered

    while t > 1 and ws_bytes(t) > vmem_budget_bytes:
        t -= 1
        while n_lanes % t:
            t -= 1
    return t * LANE, ws_bytes(t)


# --------------------------------------- wrapper ---------------------------------------

def cggcn_forward(x, A_flat, N, self_loop_W, W, line_W, line_b,
                  graph_onehot, tar_mask, path_mask, zero_path, *, tm=512):
    """Returns (node_feats[N, Dout], target_rel_emd[B, Dout], path_agg_emd[B, Dout]).

    A_flat must be pre-packed once via pack_adjacency(A, round_up(N, 128)).
    """
    f32 = jnp.float32
    Din = x.shape[1]
    R, _, Dout = W.shape
    B = graph_onehot.shape[0]

    Np = _round_up(N, LANE)               # node count padded to a lane multiple
    Dip = _round_up(Din, LANE)            # input feature dim  -> 128 lanes
    Dop = _round_up(Dout, LANE)           # output feature dim -> 128 lanes (lane-dense stores)
    assert A_flat.shape == (Np, R * Np), "A_flat must be packed with pack_adjacency(A, Np)"

    # ---- tile size + explicit VMEM budget (fits v7x 64 MiB/TC as well as v5e/v6e 128 MiB) ----
    tm, ws = _pick_tm(Np, R, tm, vmem_budget_bytes=48 << 20, bytes_a=2, dop=Dop)
    grid = Np // tm
    vmem_limit = int(min(max(ws + (8 << 20), 32 << 20), 96 << 20))

    # ---- one-time per-forward weight folding + hoisted projections (plain XLA matmuls) ----
    x_p = jnp.zeros((Np, Dip), f32).at[:N, :Din].set(x.astype(f32))
    lw_t = line_W.astype(f32).T                                             # (Dout, Dout)
    Wf = jnp.einsum('rio,oj->rij', W.astype(f32), lw_t)                     # W[r] @ line_W.T
    slwf = self_loop_W.astype(f32) @ lw_t                                   # SLW @ line_W.T
    Wf_p = jnp.zeros((R, Dip, Dop), f32).at[:, :Din, :Dout].set(Wf)
    slwf_p = jnp.zeros((Dip, Dop), f32).at[:Din, :Dout].set(slwf)

    # relation-major stacked projections: row r*Np+s = x[s] @ (W[r] @ line_W.T)   (bf16, resident)
    xw_stack = jnp.einsum('si,rio->rso', x_p, Wf_p).reshape(R * Np, Dop).astype(jnp.bfloat16)
    xsl = x_p @ slwf_p                                                       # (Np, Dop) f32, tiled
    lb_p = jnp.zeros((1, Dop), f32).at[:, :Dout].set(
        jnp.reshape(line_b, (1, -1)).astype(f32))

    cost = pl.CostEstimate(
        flops=2 * Np * (R * Np) * Dop,
        transcendentals=0,
        bytes_accessed=int(A_flat.size) * 2 + int(xw_stack.size) * 2
                       + int(xsl.size) * 4 + Dop * 4 + Np * Dop * 4,
    )

    feats = pl.pallas_call(
        _mp_kernel,
        out_shape=jax.ShapeDtypeStruct((Np, Dop), f32),
        grid=(grid,),
        in_specs=[
            pl.BlockSpec((tm, R * Np), lambda i: (i, 0)),       # A_flat dst tile (bf16, pipelined)
            pl.BlockSpec((R * Np, Dop), lambda i: (0, 0)),      # XW_stack, resident
            pl.BlockSpec((tm, Dop), lambda i: (i, 0)),          # self-loop(+line) projection tile
            pl.BlockSpec((1, Dop), lambda i: (0, 0)),           # line bias, resident
        ],
        out_specs=pl.BlockSpec((tm, Dop), lambda i: (i, 0)),    # lane-dense feats tile
        compiler_params=pltpu.CompilerParams(
            dimension_semantics=("parallel",),                  # dst-tile axis shardable across TCs
            vmem_limit_bytes=vmem_limit),
        cost_estimate=cost,
    )(A_flat, xw_stack, xsl, lb_p)

    # ---- epilogue: batched target-relation gather + path attention (single grid step) ----
    Bp = _round_up(B, SUBLANE)
    tar_idx = jnp.argmax(graph_onehot.astype(f32) * jnp.reshape(tar_mask, (1, N)).astype(f32),
                         axis=1).astype(jnp.int32)                           # (B,), one target / graph
    tar_rows = jnp.take(feats, tar_idx, axis=0)                              # (B, Dop)
    tar_rows_p = jnp.zeros((Bp, Dop), f32).at[:B].set(tar_rows)
    sel_p = jnp.zeros((Bp, Np), f32).at[:B, :N].set(
        graph_onehot.astype(f32) * jnp.reshape(path_mask, (1, N)).astype(f32))
    zpath_p = jnp.zeros((1, Dop), f32).at[:, :Dout].set(zero_path.astype(f32))

    path_out = pl.pallas_call(
        _epilogue_kernel,
        out_shape=jax.ShapeDtypeStruct((Bp, Dop), f32),
        grid=(1,),
        in_specs=[
            pl.BlockSpec((Bp, Dop), lambda i: (0, 0)),          # gathered target rows
            pl.BlockSpec((Np, Dop), lambda i: (0, 0)),          # feats, resident
            pl.BlockSpec((Bp, Np), lambda i: (0, 0)),           # per-graph path-node selection
            pl.BlockSpec((1, Dop), lambda i: (0, 0)),           # zero_path
        ],
        out_specs=pl.BlockSpec((Bp, Dop), lambda i: (0, 0)),
        compiler_params=pltpu.CompilerParams(dimension_semantics=("arbitrary",)),
    )(tar_rows_p, feats, sel_p, zpath_p)

    return feats[:N, :Dout], tar_rows[:, :Dout], path_out[:B, :Dout]


# ------------------------------------ pure reference (f64) ------------------------------------

def reference(x, A, slw, W, linw, linb, g1h, tar_m, path_m, zpath):
    x = np.asarray(x, np.float64); A = np.asarray(A, np.float64)
    slw = np.asarray(slw, np.float64); W = np.asarray(W, np.float64)
    linw = np.asarray(linw, np.float64); linb = np.asarray(linb, np.float64).reshape(1, -1)
    g1h = np.asarray(g1h, np.float64); tar_m = np.asarray(tar_m, np.float64).reshape(-1)
    path_m = np.asarray(path_m, np.float64).reshape(-1)
    zpath = np.asarray(zpath, np.float64)
    h = x @ slw
    for r in range(A.shape[0]):
        h = h + A[r] @ (x @ W[r])
    feats = np.maximum(h @ linw.T + linb, 0.0)
    tar = np.stack([feats[int(np.argmax(g1h[b] * tar_m))] for b in range(g1h.shape[0])])
    outs = []
    for b in range(g1h.shape[0]):
        mask = (g1h[b] * path_m) > 0
        if not mask.any():
            outs.append(zpath[0])
        else:
            pe = feats[mask]
            s = pe @ tar[b][:, None]
            s = s - s.max()
            a = np.exp(s); a = a / a.sum()
            outs.append((pe * a).sum(axis=0))
    return feats, tar, np.stack(outs)


# ------------------------------------------- main -------------------------------------------

if __name__ == "__main__":
    inp_dim, out_dim = 16, 32
    nodes_per_graph = [130, 120]           # N=250 -> Np=256 -> 2 dst tiles at tm=128
    B = len(nodes_per_graph)
    N = sum(nodes_per_graph)
    NUM_REL_TYPES = 4                      # self.W has shape (4, inp_dim, out_dim)

    key = jax.random.PRNGKey(0)
    ks = jax.random.split(key, 8)

    def xavier(k, shape, fan_in, fan_out):
        bound = float(np.sqrt(6.0 / (fan_in + fan_out)))
        return jax.random.uniform(k, shape, jnp.float32, -bound, bound)

    W = xavier(ks[0], (NUM_REL_TYPES, inp_dim, out_dim), inp_dim, out_dim)
    self_loop_W = xavier(ks[1], (inp_dim, out_dim), inp_dim, out_dim)
    zero_path = xavier(ks[2], (1, out_dim), 1, out_dim)
    line_W = xavier(ks[3], (out_dim, out_dim), out_dim, out_dim)
    line_b = xavier(ks[4], (1, out_dim), out_dim, out_dim)

    rng = np.random.default_rng(0)
    x = np.asarray(jax.random.normal(ks[5], (N, inp_dim), jnp.float32))

    A = np.zeros((NUM_REL_TYPES, N, N), np.float32)    # A[type, dst, src] = edge norm
    offset = 0
    for nb in nodes_per_graph:
        for n in range(nb):                            # ring edges: every node has >=1 in-edge
            src = offset + (n + 1) % nb
            dst = offset + n
            t = int(rng.integers(0, NUM_REL_TYPES))
            A[t, dst, src] += float(rng.uniform(0.2, 1.0))
        for _ in range(2 * nb):                        # random extra edges
            src = offset + int(rng.integers(0, nb))
            dst = offset + int(rng.integers(0, nb))
            t = int(rng.integers(0, NUM_REL_TYPES))
            A[t, dst, src] += float(rng.uniform(0.2, 1.0))
        offset += nb

    graph_onehot = np.zeros((B, N), np.float32)
    tar_mask = np.zeros((1, N), np.float32)
    path_mask = np.zeros((1, N), np.float32)
    offset = 0
    for b, nb in enumerate(nodes_per_graph):
        graph_onehot[b, offset:offset + nb] = 1.0
        tar_mask[0, offset] = 1.0                      # exactly one tar_rel node per graph
        if b == 0:
            path_mask[0, offset + 3:offset + 11] = 1.0 # graph 0 has path nodes
        # graph 1 has no path nodes -> exercises the zero_path branch
        offset += nb

    Np = _round_up(N, LANE)
    # Packed ONCE (per graph batch) into the fused [dst, r*Np+src] bf16 layout the kernel consumes.
    A_flat = jax.block_until_ready(pack_adjacency(jnp.asarray(A), Np))

    # tm=128 -> grid of 2 dst-node tiles at this size (exercises the tiled/pipelined path).
    feats, target_rel_emd, path_agg_emd = jax.block_until_ready(
        cggcn_forward(jnp.asarray(x), A_flat, N, self_loop_W, W, line_W, line_b,
                      jnp.asarray(graph_onehot), jnp.asarray(tar_mask),
                      jnp.asarray(path_mask), zero_path, tm=128))

    feats_r, tar_r, path_r = reference(x, A, self_loop_W, W, line_W, line_b,
                                       graph_onehot, tar_mask, path_mask, zero_path)
    # bf16 adjacency / stacked projections inside the kernel -> bf16-level tolerances.
    np.testing.assert_allclose(np.asarray(feats), feats_r, rtol=2e-2, atol=2e-2)
    np.testing.assert_allclose(np.asarray(target_rel_emd), tar_r, rtol=2e-2, atol=2e-2)
    np.testing.assert_allclose(np.asarray(path_agg_emd), path_r, rtol=5e-2, atol=5e-2)

    print("KERNEL_OK")
</pallas_src>

<mosaic_0001>
module attributes {stable_mosaic.version = 11 : i64} {
  func.func @_mp_kernel(%arg0: i32, %arg1: memref<128x1024xbf16, #tpu.memory_space<vmem>>, %arg2: memref<1024x128xbf16, #tpu.memory_space<vmem>>, %arg3: memref<128x128xf32, #tpu.memory_space<vmem>>, %arg4: memref<1x128xf32, #tpu.memory_space<vmem>>, %arg5: memref<128x128xf32, #tpu.memory_space<vmem>>) attributes {dimension_semantics = [#tpu.dimension_semantics<parallel>], iteration_bounds = array<i64: 2>, scalar_prefetch = 0 : i64, scratch_operands = 0 : i64, tpu.core_type = #tpu.core_type<tc>, window_params = [{transform_indices = @transform_0, window_bounds = array<i64: 128, 1024>}, {pipeline_mode = #tpu.pipeline_mode<synchronous>, transform_indices = @transform_1, window_bounds = array<i64: 1024, 128>}, {transform_indices = @transform_2, window_bounds = array<i64: 128, 128>}, {pipeline_mode = #tpu.pipeline_mode<synchronous>, transform_indices = @transform_3, window_bounds = array<i64: 1, 128>}, {transform_indices = @transform_4, window_bounds = array<i64: 128, 128>}]} {
    %c0 = arith.constant 0 : index
    %c0_0 = arith.constant 0 : index
    %0 = vector.load %arg1[%c0, %c0_0] : memref<128x1024xbf16, #tpu.memory_space<vmem>>, vector<128x1024xbf16>
    %c0_1 = arith.constant 0 : index
    %c0_2 = arith.constant 0 : index
    %1 = vector.load %arg2[%c0_1, %c0_2] : memref<1024x128xbf16, #tpu.memory_space<vmem>>, vector<1024x128xbf16>
    %cst = arith.constant dense<0.000000e+00> : vector<128x128xf32>
    %2 = tpu.matmul %0, %1, %cst {dimension_numbers = #tpu.dot_dimension_numbers<[1], [0], [0], [1], [0, 0, 1, 1], [], []>} : vector<128x1024xbf16>, vector<1024x128xbf16>, vector<128x128xf32> -> vector<128x128xf32>
    %c0_3 = arith.constant 0 : index
    %c0_4 = arith.constant 0 : index
    %3 = vector.load %arg3[%c0_3, %c0_4] : memref<128x128xf32, #tpu.memory_space<vmem>>, vector<128x128xf32>
    %4 = arith.addf %2, %3 : vector<128x128xf32>
    %c0_5 = arith.constant 0 : index
    %c0_6 = arith.constant 0 : index
    %5 = vector.load %arg4[%c0_5, %c0_6] : memref<1x128xf32, #tpu.memory_space<vmem>>, vector<1x128xf32>
    %6 = vector.broadcast %5 : vector<1x128xf32> to vector<128x128xf32>
    %7 = arith.addf %4, %6 : vector<128x128xf32>
    %cst_7 = arith.constant 0.000000e+00 : f32
    %8 = vector.broadcast %cst_7 : f32 to vector<128x128xf32>
    %9 = arith.maximumf %7, %8 : vector<128x128xf32>
    %c0_8 = arith.constant 0 : index
    %c0_9 = arith.constant 0 : index
    %10 = vector.load %arg5[%c0_8, %c0_9] : memref<128x128xf32, #tpu.memory_space<vmem>>, vector<128x128xf32>
    tpu.vector_store %arg5[%c0_8, %c0_9], %9 {strides = array<i32>} : memref<128x128xf32, #tpu.memory_space<vmem>>, vector<128x128xf32>,
    return
  }
  func.func @transform_0(%arg0: i32) -> (i32, i32) {
    %c0_i32 = arith.constant 0 : i32
    %c0_i32_0 = arith.constant 0 : i32
    return %arg0, %c0_i32 : i32, i32
  }
  func.func @transform_1(%arg0: i32) -> (i32, i32) {
    %c0_i32 = arith.constant 0 : i32
    %c0_i32_0 = arith.constant 0 : i32
    %c0_i32_1 = arith.constant 0 : i32
    return %c0_i32, %c0_i32_0 : i32, i32
  }
  func.func @transform_2(%arg0: i32) -> (i32, i32) {
    %c0_i32 = arith.constant 0 : i32
    %c0_i32_0 = arith.constant 0 : i32
    return %arg0, %c0_i32 : i32, i32
  }
  func.func @transform_3(%arg0: i32) -> (i32, i32) {
    %c0_i32 = arith.constant 0 : i32
    %c0_i32_0 = arith.constant 0 : i32
    %c0_i32_1 = arith.constant 0 : i32
    return %c0_i32, %c0_i32_0 : i32, i32
  }
  func.func @transform_4(%arg0: i32) -> (i32, i32) {
    %c0_i32 = arith.constant 0 : i32
    %c0_i32_0 = arith.constant 0 : i32
    return %arg0, %c0_i32 : i32, i32
  }
}

</mosaic_0001>

<llo_original>
// kernel: tpu_custom_call.1
$region0: #{tpu_custom_call.1}
  #allocation0 [shape = 'u32[]', space=smem, size = 0x4, offset = 0x4, fixed_abs, tag = 'smem constant byte address 0x4 - core index']
  #allocation1 [shape = 'u32[144,128]{1,0:T(1,128)}', space=vmem, size = 0x12000, scoped, tag = 'internal scratch']
  %s0 = inlined_call_operand.hbm [shape: bf16[256,1024], index: 0, kind: input, shape index: {}]
  %s1 = inlined_call_operand.hbm [shape: bf16[1024,128], index: 1, kind: input, shape index: {}]
  %s2 = inlined_call_operand.hbm [shape: f32[256,128], index: 2, kind: input, shape index: {}]
  %s3 = inlined_call_operand.vmem [shape: f32[1,128], index: 3, kind: input, shape index: {}]
  %s4 = inlined_call_operand.hbm [shape: f32[256,128], index: 4, kind: output, shape index: {}]
  %s5 = sld [smem:[#allocation0]]
  $region61: #{tpu_custom_call.1} parent=0
    _
  %s7 = ssub.s32 1, %s5
  %s8 = scalar_select 0, %s7, %s5
  $region1: #{tpu_custom_call.1} parent=0
    #allocation2 [shape = 'u8[524288]{0}', space=vmem, size = 0x80000, scoped, tag = 'input window, operand 0']
    #allocation3 [shape = 's32[2]{0}', space=sflag, size = 0x8, scoped, tag = 'scoped memory for tpu_custom_call.1']
    #allocation4 [shape = 's32[2]{0}', space=sflag, size = 0x8, scoped, tag = 'scoped memory for tpu_custom_call.1']
    #allocation5 [shape = 'u8[262144]{0}', space=vmem, size = 0x40000, scoped, tag = 'input window, operand 1, single buffered']
    #allocation6 [shape = 's32[1]{0}', space=sflag, size = 0x4, scoped, tag = 'scoped memory for tpu_custom_call.1']
    #allocation7 [shape = 'u8[131072]{0}', space=vmem, size = 0x20000, scoped, tag = 'input window, operand 2']
    #allocation8 [shape = 'u8[131072]{0}', space=vmem, size = 0x20000, scoped, tag = 'output window, operand 0']
    %9 = vsyncpa [#allocation3], 0
    %s10 = scalar_lea.sflag [#allocation3], 1
    %11 = vsyncpa %s10, 0
    %12 = vsyncpa [#allocation6], 0
    %13 = vsyncpa [#allocation4], 0
    %s14 = scalar_lea.sflag [#allocation4], 1
    %15 = vsyncpa %s14, 0
    loop: start=0, step=1, limit=4
    $region2: #{tpu_custom_call.1} parent=1 // loop_pre_header
      _
    $region3: #{tpu_custom_call.1} parent=1 // loop_header
      %s17 = sphi 0, %s21
      %p18 = scmp.ge.s32.totalorder %s17, 4
      %s27 = sphi 0, %s29
      %s30 = sphi 0, %s27
      %s31 = sphi 0, %s30
      %s47 = sphi 0, %s31
      %s51 = sphi 0, %s51
      %s53 = sphi 0, %s51
      %s54 = sphi 0, %s53
      %s68 = sphi 0, %s54
      %s74 = sphi 0, %s76
      %s77 = sphi 0, %s74
      %s78 = sphi 0, %s77
      %s94 = sphi 0, %s78
      %s98 = sphi 0, %s98
      %s100 = sphi 0, %s98
      %s101 = sphi 0, %s100
      %s115 = sphi 0, %s101
      %s121 = sphi 0, %s123
      %s124 = sphi 0, %s121
      %s125 = sphi 0, %s124
      %s141 = sphi 0, %s125
    $region4: #{tpu_custom_call.1} parent=1 // loop_header_branch
      %20 = sbr.rel (%p18) target = $region8
    $region5: #{tpu_custom_call.1} parent=1 // loop_body
      %s22 = ssub.s32 %s17, 1
      %s23 = ssub.s32 %s17, 2
      %s24 = sadd.s32 %s17, 1
      %s25 = ssub.s32 %s17, %s24
      %p26 = scmp.eq.s32.totalorder %s25, 0
      %s28 = sadd.s32 %s27, 1
      %s29 = scalar_select %p26, %s27, %s28
      %p32 = pneg %p26
      %p33 = scmp.eq.s32.totalorder %s17, 1
      %p34 = por %p32, %p33
      %p35 = scmp.ne.s32.totalorder %s27, %s30
      %p36 = scmp.eq.s32.totalorder %s17, 0
      %p37 = por %p35, %p36
      %p38 = scmp.ne.s32.totalorder %s27, %s30
      %p39 = scmp.eq.s32.totalorder %s22, 1
      %p40 = por %p38, %p39
      %p41 = scmp.ne.s32.totalorder %s30, %s31
      %p42 = scmp.eq.s32.totalorder %s22, 0
      %p43 = por %p41, %p42
      %p44 = scmp.ne.s32.totalorder %s30, %s31
      %p45 = scmp.eq.s32.totalorder %s23, 1
      %p46 = por %p44, %p45
      %p48 = scmp.ne.s32.totalorder %s31, %s47
      %p49 = scmp.eq.s32.totalorder %s23, 0
      %p50 = por %p48, %p49
      %s52 = sadd.s32 %s51, 1
      %p55 = scmp.eq.s32.totalorder %s17, 1
      %p56 = scmp.ne.s32.totalorder %s51, %s53
      %p57 = scmp.eq.s32.totalorder %s17, 0
      %p58 = por %p56, %p57
      %p59 = scmp.ne.s32.totalorder %s51, %s53
      %p60 = scmp.eq.s32.totalorder %s22, 1
      %p61 = por %p59, %p60
      %p62 = scmp.ne.s32.totalorder %s53, %s54
      %p63 = scmp.eq.s32.totalorder %s22, 0
      %p64 = por %p62, %p63
      %p65 = scmp.ne.s32.totalorder %s53, %s54
      %p66 = scmp.eq.s32.totalorder %s23, 1
      %p67 = por %p65, %p66
      %p69 = scmp.ne.s32.totalorder %s54, %s68
      %p70 = scmp.eq.s32.totalorder %s23, 0
      %p71 = por %p69, %p70
      %s72 = ssub.s32 %s17, %s24
      %p73 = scmp.eq.s32.totalorder %s72, 0
      %s75 = sadd.s32 %s74, 1
      %s76 = scalar_select %p73, %s74, %s75
      %p79 = pneg %p73
      %p80 = scmp.eq.s32.totalorder %s17, 1
      %p81 = por %p79, %p80
      %p82 = scmp.ne.s32.totalorder %s74, %s77
      %p83 = scmp.eq.s32.totalorder %s17, 0
      %p84 = por %p82, %p83
      %p85 = scmp.ne.s32.totalorder %s74, %s77
      %p86 = scmp.eq.s32.totalorder %s22, 1
      %p87 = por %p85, %p86
      %p88 = scmp.ne.s32.totalorder %s77, %s78
      %p89 = scmp.eq.s32.totalorder %s22, 0
      %p90 = por %p88, %p89
      %p91 = scmp.ne.s32.totalorder %s77, %s78
      %p92 = scmp.eq.s32.totalorder %s23, 1
      %p93 = por %p91, %p92
      %p95 = scmp.ne.s32.totalorder %s78, %s94
      %p96 = scmp.eq.s32.totalorder %s23, 0
      %p97 = por %p95, %p96
      %s99 = sadd.s32 %s98, 1
      %p102 = scmp.eq.s32.totalorder %s17, 1
      %p103 = scmp.ne.s32.totalorder %s98, %s100
      %p104 = scmp.eq.s32.totalorder %s17, 0
      %p105 = por %p103, %p104
      %p106 = scmp.ne.s32.totalorder %s98, %s100
      %p107 = scmp.eq.s32.totalorder %s22, 1
      %p108 = por %p106, %p107
      %p109 = scmp.ne.s32.totalorder %s100, %s101
      %p110 = scmp.eq.s32.totalorder %s22, 0
      %p111 = por %p109, %p110
      %p112 = scmp.ne.s32.totalorder %s100, %s101
      %p113 = scmp.eq.s32.totalorder %s23, 1
      %p114 = por %p112, %p113
      %p116 = scmp.ne.s32.totalorder %s101, %s115
      %p117 = scmp.eq.s32.totalorder %s23, 0
      %p118 = por %p116, %p117
      %s119 = ssub.s32 %s17, %s24
      %p120 = scmp.eq.s32.totalorder %s119, 0
      %s122 = sadd.s32 %s121, 1
      %s123 = scalar_select %p120, %s121, %s122
      %p126 = pneg %p120
      %p127 = scmp.eq.s32.totalorder %s17, 1
      %p128 = por %p126, %p127
      %p129 = scmp.ne.s32.totalorder %s121, %s124
      %p130 = scmp.eq.s32.totalorder %s17, 0
      %p131 = por %p129, %p130
      %p132 = scmp.ne.s32.totalorder %s121, %s124
      %p133 = scmp.eq.s32.totalorder %s22, 1
      %p134 = por %p132, %p133
      %p135 = scmp.ne.s32.totalorder %s124, %s125
      %p136 = scmp.eq.s32.totalorder %s22, 0
      %p137 = por %p135, %p136
      %p138 = scmp.ne.s32.totalorder %s124, %s125
      %p139 = scmp.eq.s32.totalorder %s23, 1
      %p140 = por %p138, %p139
      %p142 = scmp.ne.s32.totalorder %s125, %s141
      %p143 = scmp.eq.s32.totalorder %s23, 0
      %p144 = por %p142, %p143
      %p145 = scmp.le.s32.totalorder 1, %s17
      %p146 = scmp.lt.s32.totalorder %s17, 3
      %p147 = pnand %p145, %p146
      %p148 = pneg %p147
      // Predicated region
      $region9: #{tpu_custom_call.1} parent=5 // pred_check
        _
      $region10: #{tpu_custom_call.1} parent=5 // pred_check_branch
        %150 = sbr.rel (%p147) target = $region12
      $region11: #{tpu_custom_call.1} parent=5 // pred_region
        %s151 = ssub.s32 %s17, 1
        // Predicated region
        $region13: #{tpu_custom_call.1} parent=11 // pred_check
          %p152 = pneg %p64
        $region14: #{tpu_custom_call.1} parent=11 // pred_check_branch
          %154 = sbr.rel (%p152) target = $region16
        $region15: #{tpu_custom_call.1} parent=11 // pred_region
          %s156 = ssub.s32 8192, 8192
          %157 = vsyncadd [#allocation6], %s156
          %s158 = sshll.u32 [#allocation5], 4
          %s159 = int_to_ptr.vmem [resolvable:$true] %s158
          %164 = dma.hbm_to_vmem [thread:$0]  %s1, 8192, %s159, [#allocation6], 64, 64, 4
        $region16: #{tpu_custom_call.1} parent=11 // pred_fallthru
          _
        // Predicated region
        $region17: #{tpu_custom_call.1} parent=11 // pred_check
          %p165 = pneg %p111
        $region18: #{tpu_custom_call.1} parent=11 // pred_check_branch
          %167 = sbr.rel (%p165) target = $region20
        $region19: #{tpu_custom_call.1} parent=11 // pred_region
          _
        $region20: #{tpu_custom_call.1} parent=11 // pred_fallthru
          _
      $region12: #{tpu_custom_call.1} parent=5 // pred_fallthru
        _
      %p168 = scmp.lt.s32.totalorder %s17, 2
      // Predicated region
      $region21: #{tpu_custom_call.1} parent=5 // pred_check
        %p169 = pneg %p168
      $region22: #{tpu_custom_call.1} parent=5 // pred_check_branch
        %171 = sbr.rel (%p169) target = $region24
      $region23: #{tpu_custom_call.1} parent=5 // pred_region
        // Predicated region
        $region25: #{tpu_custom_call.1} parent=23 // pred_check
          %p172 = pneg %p37
        $region26: #{tpu_custom_call.1} parent=23 // pred_check_branch
          %174 = sbr.rel (%p172) target = $region28
        $region27: #{tpu_custom_call.1} parent=23 // pred_region
          %s175 = sand.u32 %s17, 1
          %s176 = scalar_lea.sflag [#allocation3], %s175
          %s177 = sand.u32 %s27, 1
          %s178 = smul.addr %s177, 512
          %s179 = scalar_lea.vmem [#allocation2], %s178
          %s180 = smul.u32 16, %s17
          %s182 = ssub.s32 8192, 8192
          %183 = vsyncadd %s176, %s182
          %s184 = smul.addr %s180, 8
          %s185 = smul.addr %s184, 64
          %s186 = scalar_lea.hbm %s0, %s185
          %s187 = sshll.u32 %s179, 4
          %s188 = int_to_ptr.vmem [resolvable:$true] %s187
          %193 = dma.hbm_to_vmem [thread:$0]  %s186, 8192, %s188, %s176, 512, 512, 32
        $region28: #{tpu_custom_call.1} parent=23 // pred_fallthru
          _
        // Predicated region
        $region29: #{tpu_custom_call.1} parent=23 // pred_check
          %p194 = pneg %p84
        $region30: #{tpu_custom_call.1} parent=23 // pred_check_branch
          %196 = sbr.rel (%p194) target = $region32
        $region31: #{tpu_custom_call.1} parent=23 // pred_region
          %s197 = sand.u32 %s17, 1
          %s198 = scalar_lea.sflag [#allocation3], %s197
          %s199 = sand.u32 %s74, 1
          %s200 = smul.addr %s199, 128
          %s201 = scalar_lea.vmem [#allocation7], %s200
          %s202 = smul.u32 16, %s17
          %s204 = ssub.s32 2048, 2048
          %205 = vsyncadd %s198, %s204
          %s206 = smul.addr %s202, 128
          %s207 = scalar_lea.hbm %s2, %s206
          %s208 = sshll.u32 %s201, 4
          %s209 = int_to_ptr.vmem [resolvable:$true] %s208
          %214 = dma.hbm_to_vmem [thread:$0]  %s207, 2048, %s209, %s198, 128, 128, 8
        $region32: #{tpu_custom_call.1} parent=23 // pred_fallthru
          _
      $region24: #{tpu_custom_call.1} parent=5 // pred_fallthru
        _
      %p215 = scmp.le.s32.totalorder 1, %s17
      %p216 = scmp.lt.s32.totalorder %s17, 3
      %p217 = pnand %p215, %p216
      %p218 = pneg %p217
      // Predicated region
      $region33: #{tpu_custom_call.1} parent=5 // pred_check
        _
      $region34: #{tpu_custom_call.1} parent=5 // pred_check_branch
        %220 = sbr.rel (%p217) target = $region36
      $region35: #{tpu_custom_call.1} parent=5 // pred_region
        %s221 = ssub.s32 %s17, 1
        %s222 = sand.u32 %s22, 1
        %s223 = scalar_lea.sflag [#allocation3], %s222
        %s224 = sand.u32 %s30, 1
        %s225 = smul.addr %s224, 512
        %s226 = scalar_lea.vmem [#allocation2], %s225
        // Predicated region
        $region37: #{tpu_custom_call.1} parent=35 // pred_check
          %p227 = pneg %p43
        $region38: #{tpu_custom_call.1} parent=35 // pred_check_branch
          %229 = sbr.rel (%p227) target = $region40
        $region39: #{tpu_custom_call.1} parent=35 // pred_region
          %230 = dma.done %s223, 8192
        $region40: #{tpu_custom_call.1} parent=35 // pred_fallthru
          _
        // Predicated region
        $region41: #{tpu_custom_call.1} parent=35 // pred_check
          %p231 = pneg %p64
        $region42: #{tpu_custom_call.1} parent=35 // pred_check_branch
          %233 = sbr.rel (%p231) target = $region44
        $region43: #{tpu_custom_call.1} parent=35 // pred_region
          %234 = dma.done [#allocation6], 8192
        $region44: #{tpu_custom_call.1} parent=35 // pred_fallthru
          _
        %s235 = sand.u32 %s22, 1
        %s236 = scalar_lea.sflag [#allocation3], %s235
        %s237 = sand.u32 %s77, 1
        %s238 = smul.addr %s237, 128
        %s239 = scalar_lea.vmem [#allocation7], %s238
        // Predicated region
        $region45: #{tpu_custom_call.1} parent=35 // pred_check
          %p240 = pneg %p90
        $region46: #{tpu_custom_call.1} parent=35 // pred_check_branch
          %242 = sbr.rel (%p240) target = $region48
        $region47: #{tpu_custom_call.1} parent=35 // pred_region
          %243 = dma.done %s236, 2048
        $region48: #{tpu_custom_call.1} parent=35 // pred_fallthru
          _
        %s244 = sand.u32 %s22, 1
        %s245 = scalar_lea.sflag [#allocation3], %s244
        %s246 = sand.u32 %s30, 1
        %s247 = smul.addr %s246, 512
        %s248 = scalar_lea.vmem [#allocation2], %s247
        %p249 = pneg %p43
        %p250 = pneg %p40
        %p251 = pneg %p64
        %p252 = pneg %p61
        %s253 = sand.u32 %s22, 1
        %s254 = scalar_lea.sflag [#allocation3], %s253
        %s255 = sand.u32 %s77, 1
        %s256 = smul.addr %s255, 128
        %s257 = scalar_lea.vmem [#allocation7], %s256
        %p258 = pneg %p90
        %p259 = pneg %p87
        %p260 = pneg %p111
        %p261 = pneg %p108
        %p262 = pneg %p137
        %p263 = pneg %p134
        %s264 = sand.u32 %s124, 1
        %s265 = scalar_lea.sflag [#allocation4], %s264
        %s266 = sand.u32 %s124, 1
        %s267 = smul.addr %s266, 128
        %s268 = scalar_lea.vmem [#allocation8], %s267
        %s269 = smul.u32 16, %s22
        %s270 = smul.u32 16, %s22
        %s271 = smul.u32 16, %s22
        %v273 = vld [vmem:[%s226] sm:$0xff]
        %v274 = vld [vmem:[%s226 + $0x8] sm:$0xff]
        %v275 = vld [vmem:[%s226 + $0x10] sm:$0xff]
        %v276 = vld [vmem:[%s226 + $0x18] sm:$0xff]
        %v277 = vld [vmem:[%s226 + $0x20] sm:$0xff]
        %v278 = vld [vmem:[%s226 + $0x28] sm:$0xff]
        %v279 = vld [vmem:[%s226 + $0x30] sm:$0xff]
        %v280 = vld [vmem:[%s226 + $0x38] sm:$0xff]
        %v281 = vld [vmem:[%s226 + $0x40] sm:$0xff]
        %v282 = vld [vmem:[%s226 + $0x48] sm:$0xff]
        %v283 = vld [vmem:[%s226 + $0x50] sm:$0xff]
        %v284 = vld [vmem:[%s226 + $0x58] sm:$0xff]
        %v285 = vld [vmem:[%s226 + $0x60] sm:$0xff]
        %v286 = vld [vmem:[%s226 + $0x68] sm:$0xff]
        %v287 = vld [vmem:[%s226 + $0x70] sm:$0xff]
        %v288 = vld [vmem:[%s226 + $0x78] sm:$0xff]
        %v289 = vld [vmem:[%s226 + $0x80] sm:$0xff]
        %v290 = vld [vmem:[%s226 + $0x88] sm:$0xff]
        %v291 = vld [vmem:[%s226 + $0x90] sm:$0xff]
        %v292 = vld [vmem:[%s226 + $0x98] sm:$0xff]
        %v293 = vld [vmem:[%s226 + $0xa0] sm:$0xff]
        %v294 = vld [vmem:[%s226 + $0xa8] sm:$0xff]
        %v295 = vld [vmem:[%s226 + $0xb0] sm:$0xff]
        %v296 = vld [vmem:[%s226 + $0xb8] sm:$0xff]
        %v297 = vld [vmem:[%s226 + $0xc0] sm:$0xff]
        %v298 = vld [vmem:[%s226 + $0xc8] sm:$0xff]
        %v299 = vld [vmem:[%s226 + $0xd0] sm:$0xff]
        %v300 = vld [vmem:[%s226 + $0xd8] sm:$0xff]
        %v301 = vld [vmem:[%s226 + $0xe0] sm:$0xff]
        %v302 = vld [vmem:[%s226 + $0xe8] sm:$0xff]
        %v303 = vld [vmem:[%s226 + $0xf0] sm:$0xff]
        %v304 = vld [vmem:[%s226 + $0xf8] sm:$0xff]
        %v305 = vld [vmem:[%s226 + $0x100] sm:$0xff]
        %v306 = vld [vmem:[%s226 + $0x108] sm:$0xff]
        %v307 = vld [vmem:[%s226 + $0x110] sm:$0xff]
        %v308 = vld [vmem:[%s226 + $0x118] sm:$0xff]
        %v309 = vld [vmem:[%s226 + $0x120] sm:$0xff]
        %v310 = vld [vmem:[%s226 + $0x128] sm:$0xff]
        %v311 = vld [vmem:[%s226 + $0x130] sm:$0xff]
        %v312 = vld [vmem:[%s226 + $0x138] sm:$0xff]
        %v313 = vld [vmem:[%s226 + $0x140] sm:$0xff]
        %v314 = vld [vmem:[%s226 + $0x148] sm:$0xff]
        %v315 = vld [vmem:[%s226 + $0x150] sm:$0xff]
        %v316 = vld [vmem:[%s226 + $0x158] sm:$0xff]
        %v317 = vld [vmem:[%s226 + $0x160] sm:$0xff]
        %v318 = vld [vmem:[%s226 + $0x168] sm:$0xff]
        %v319 = vld [vmem:[%s226 + $0x170] sm:$0xff]
        %v320 = vld [vmem:[%s226 + $0x178] sm:$0xff]
        %v321 = vld [vmem:[%s226 + $0x180] sm:$0xff]
        %v322 = vld [vmem:[%s226 + $0x188] sm:$0xff]
        %v323 = vld [vmem:[%s226 + $0x190] sm:$0xff]
        %v324 = vld [vmem:[%s226 + $0x198] sm:$0xff]
        %v325 = vld [vmem:[%s226 + $0x1a0] sm:$0xff]
        %v326 = vld [vmem:[%s226 + $0x1a8] sm:$0xff]
        %v327 = vld [vmem:[%s226 + $0x1b0] sm:$0xff]
        %v328 = vld [vmem:[%s226 + $0x1b8] sm:$0xff]
        %v329 = vld [vmem:[%s226 + $0x1c0] sm:$0xff]
        %v330 = vld [vmem:[%s226 + $0x1c8] sm:$0xff]
        %v331 = vld [vmem:[%s226 + $0x1d0] sm:$0xff]
        %v332 = vld [vmem:[%s226 + $0x1d8] sm:$0xff]
        %v333 = vld [vmem:[%s226 + $0x1e0] sm:$0xff]
        %v334 = vld [vmem:[%s226 + $0x1e8] sm:$0xff]
        %v335 = vld [vmem:[%s226 + $0x1f0] sm:$0xff]
        %v336 = vld [vmem:[%s226 + $0x1f8] sm:$0xff]
        %v337 = vld [vmem:[#allocation5] sm:$0xf]
        %v338 = vld [vmem:[#allocation5 + $0x4] sm:$0xf]
        %v339 = vld [vmem:[#allocation5 + $0x8] sm:$0xf]
        %v340 = vld [vmem:[#allocation5 + $0xc] sm:$0xf]
        %v341 = vld [vmem:[#allocation5 + $0x10] sm:$0xf]
        %v342 = vld [vmem:[#allocation5 + $0x14] sm:$0xf]
        %v343 = vld [vmem:[#allocation5 + $0x18] sm:$0xf]
        %v344 = vld [vmem:[#allocation5 + $0x1c] sm:$0xf]
        %v345 = vld [vmem:[#allocation5 + $0x20] sm:$0xf]
        %v346 = vld [vmem:[#allocation5 + $0x24] sm:$0xf]
        %v347 = vld [vmem:[#allocation5 + $0x28] sm:$0xf]
        %v348 = vld [vmem:[#allocation5 + $0x2c] sm:$0xf]
        %v349 = vld [vmem:[#allocation5 + $0x30] sm:$0xf]
        %v350 = vld [vmem:[#allocation5 + $0x34] sm:$0xf]
        %v351 = vld [vmem:[#allocation5 + $0x38] sm:$0xf]
        %v352 = vld [vmem:[#allocation5 + $0x3c] sm:$0xf]
        %v353 = vld [vmem:[#allocation5 + $0x40] sm:$0xf]
        %v354 = vld [vmem:[#allocation5 + $0x44] sm:$0xf]
        %v355 = vld [vmem:[#allocation5 + $0x48] sm:$0xf]
        %v356 = vld [vmem:[#allocation5 + $0x4c] sm:$0xf]
        %v357 = vld [vmem:[#allocation5 + $0x50] sm:$0xf]
        %v358 = vld [vmem:[#allocation5 + $0x54] sm:$0xf]
        %v359 = vld [vmem:[#allocation5 + $0x58] sm:$0xf]
        %v360 = vld [vmem:[#allocation5 + $0x5c] sm:$0xf]
        %v361 = vld [vmem:[#allocation5 + $0x60] sm:$0xf]
        %v362 = vld [vmem:[#allocation5 + $0x64] sm:$0xf]
        %v363 = vld [vmem:[#allocation5 + $0x68] sm:$0xf]
        %v364 = vld [vmem:[#allocation5 + $0x6c] sm:$0xf]
        %v365 = vld [vmem:[#allocation5 + $0x70] sm:$0xf]
        %v366 = vld [vmem:[#allocation5 + $0x74] sm:$0xf]
        %v367 = vld [vmem:[#allocation5 + $0x78] sm:$0xf]
        %v368 = vld [vmem:[#allocation5 + $0x7c] sm:$0xf]
        %v369 = vld [vmem:[#allocation5 + $0x80] sm:$0xf]
        %v370 = vld [vmem:[#allocation5 + $0x84] sm:$0xf]
        %v371 = vld [vmem:[#allocation5 + $0x88] sm:$0xf]
        %v372 = vld [vmem:[#allocation5 + $0x8c] sm:$0xf]
        %v373 = vld [vmem:[#allocation5 + $0x90] sm:$0xf]
        %v374 = vld [vmem:[#allocation5 + $0x94] sm:$0xf]
        %v375 = vld [vmem:[#allocation5 + $0x98] sm:$0xf]
        %v376 = vld [vmem:[#allocation5 + $0x9c] sm:$0xf]
        %v377 = vld [vmem:[#allocation5 + $0xa0] sm:$0xf]
        %v378 = vld [vmem:[#allocation5 + $0xa4] sm:$0xf]
        %v379 = vld [vmem:[#allocation5 + $0xa8] sm:$0xf]
        %v380 = vld [vmem:[#allocation5 + $0xac] sm:$0xf]
        %v381 = vld [vmem:[#allocation5 + $0xb0] sm:$0xf]
        %v382 = vld [vmem:[#allocation5 + $0xb4] sm:$0xf]
        %v383 = vld [vmem:[#allocation5 + $0xb8] sm:$0xf]
        %v384 = vld [vmem:[#allocation5 + $0xbc] sm:$0xf]
        %v385 = vld [vmem:[#allocation5 + $0xc0] sm:$0xf]
        %v386 = vld [vmem:[#allocation5 + $0xc4] sm:$0xf]
        %v387 = vld [vmem:[#allocation5 + $0xc8] sm:$0xf]
        %v388 = vld [vmem:[#allocation5 + $0xcc] sm:$0xf]
        %v389 = vld [vmem:[#allocation5 + $0xd0] sm:$0xf]
        %v390 = vld [vmem:[#allocation5 + $0xd4] sm:$0xf]
        %v391 = vld [vmem:[#allocation5 + $0xd8] sm:$0xf]
        %v392 = vld [vmem:[#allocation5 + $0xdc] sm:$0xf]
        %v393 = vld [vmem:[#allocation5 + $0xe0] sm:$0xf]
        %v394 = vld [vmem:[#allocation5 + $0xe4] sm:$0xf]
        %v395 = vld [vmem:[#allocation5 + $0xe8] sm:$0xf]
        %v396 = vld [vmem:[#allocation5 + $0xec] sm:$0xf]
        %v397 = vld [vmem:[#allocation5 + $0xf0] sm:$0xf]
        %v398 = vld [vmem:[#allocation5 + $0xf4] sm:$0xf]
        %v399 = vld [vmem:[#allocation5 + $0xf8] sm:$0xf]
        %v400 = vld [vmem:[#allocation5 + $0xfc] sm:$0xf]
        %v401 = vld [vmem:[#allocation5 + $0x100] sm:$0xf]
        %v402 = vld [vmem:[#allocation5 + $0x104] sm:$0xf]
        %v403 = vld [vmem:[#allocation5 + $0x108] sm:$0xf]
        %v404 = vld [vmem:[#allocation5 + $0x10c] sm:$0xf]
        %v405 = vld [vmem:[#allocation5 + $0x110] sm:$0xf]
        %v406 = vld [vmem:[#allocation5 + $0x114] sm:$0xf]
        %v407 = vld [vmem:[#allocation5 + $0x118] sm:$0xf]
        %v408 = vld [vmem:[#allocation5 + $0x11c] sm:$0xf]
        %v409 = vld [vmem:[#allocation5 + $0x120] sm:$0xf]
        %v410 = vld [vmem:[#allocation5 + $0x124] sm:$0xf]
        %v411 = vld [vmem:[#allocation5 + $0x128] sm:$0xf]
        %v412 = vld [vmem:[#allocation5 + $0x12c] sm:$0xf]
        %v413 = vld [vmem:[#allocation5 + $0x130] sm:$0xf]
        %v414 = vld [vmem:[#allocation5 + $0x134] sm:$0xf]
        %v415 = vld [vmem:[#allocation5 + $0x138] sm:$0xf]
        %v416 = vld [vmem:[#allocation5 + $0x13c] sm:$0xf]
        %v417 = vld [vmem:[#allocation5 + $0x140] sm:$0xf]
        %v418 = vld [vmem:[#allocation5 + $0x144] sm:$0xf]
        %v419 = vld [vmem:[#allocation5 + $0x148] sm:$0xf]
        %v420 = vld [vmem:[#allocation5 + $0x14c] sm:$0xf]
        %v421 = vld [vmem:[#allocation5 + $0x150] sm:$0xf]
        %v422 = vld [vmem:[#allocation5 + $0x154] sm:$0xf]
        %v423 = vld [vmem:[#allocation5 + $0x158] sm:$0xf]
        %v424 = vld [vmem:[#allocation5 + $0x15c] sm:$0xf]
        %v425 = vld [vmem:[#allocation5 + $0x160] sm:$0xf]
        %v426 = vld [vmem:[#allocation5 + $0x164] sm:$0xf]
        %v427 = vld [vmem:[#allocation5 + $0x168] sm:$0xf]
        %v428 = vld [vmem:[#allocation5 + $0x16c] sm:$0xf]
        %v429 = vld [vmem:[#allocation5 + $0x170] sm:$0xf]
        %v430 = vld [vmem:[#allocation5 + $0x174] sm:$0xf]
        %v431 = vld [vmem:[#allocation5 + $0x178] sm:$0xf]
        %v432 = vld [vmem:[#allocation5 + $0x17c] sm:$0xf]
        %v433 = vld [vmem:[#allocation5 + $0x180] sm:$0xf]
        %v434 = vld [vmem:[#allocation5 + $0x184] sm:$0xf]
        %v435 = vld [vmem:[#allocation5 + $0x188] sm:$0xf]
        %v436 = vld [vmem:[#allocation5 + $0x18c] sm:$0xf]
        %v437 = vld [vmem:[#allocation5 + $0x190] sm:$0xf]
        %v438 = vld [vmem:[#allocation5 + $0x194] sm:$0xf]
        %v439 = vld [vmem:[#allocation5 + $0x198] sm:$0xf]
        %v440 = vld [vmem:[#allocation5 + $0x19c] sm:$0xf]
        %v441 = vld [vmem:[#allocation5 + $0x1a0] sm:$0xf]
        %v442 = vld [vmem:[#allocation5 + $0x1a4] sm:$0xf]
        %v443 = vld [vmem:[#allocation5 + $0x1a8] sm:$0xf]
        %v444 = vld [vmem:[#allocation5 + $0x1ac] sm:$0xf]
        %v445 = vld [vmem:[#allocation5 + $0x1b0] sm:$0xf]
        %v446 = vld [vmem:[#allocation5 + $0x1b4] sm:$0xf]
        %v447 = vld [vmem:[#allocation5 + $0x1b8] sm:$0xf]
        %v448 = vld [vmem:[#allocation5 + $0x1bc] sm:$0xf]
        %v449 = vld [vmem:[#allocation5 + $0x1c0] sm:$0xf]
        %v450 = vld [vmem:[#allocation5 + $0x1c4] sm:$0xf]
        %v451 = vld [vmem:[#allocation5 + $0x1c8] sm:$0xf]
        %v452 = vld [vmem:[#allocation5 + $0x1cc] sm:$0xf]
        %v453 = vld [vmem:[#allocation5 + $0x1d0] sm:$0xf]
        %v454 = vld [vmem:[#allocation5 + $0x1d4] sm:$0xf]
        %v455 = vld [vmem:[#allocation5 + $0x1d8] sm:$0xf]
        %v456 = vld [vmem:[#allocation5 + $0x1dc] sm:$0xf]
        %v457 = vld [vmem:[#allocation5 + $0x1e0] sm:$0xf]
        %v458 = vld [vmem:[#allocation5 + $0x1e4] sm:$0xf]
        %v459 = vld [vmem:[#allocation5 + $0x1e8] sm:$0xf]
        %v460 = vld [vmem:[#allocation5 + $0x1ec] sm:$0xf]
        %v461 = vld [vmem:[#allocation5 + $0x1f0] sm:$0xf]
        %v462 = vld [vmem:[#allocation5 + $0x1f4] sm:$0xf]
        %v463 = vld [vmem:[#allocation5 + $0x1f8] sm:$0xf]
        %v464 = vld [vmem:[#allocation5 + $0x1fc] sm:$0xf]
        %v465 = vld [vmem:[%s239] sm:$0xff]
        %v466 = vld [vmem:[%s239 + $0x8] sm:$0xff]
        %v467 = vld [vmem:[%s239 + $0x10] sm:$0xff]
        %v468 = vld [vmem:[%s239 + $0x18] sm:$0xff]
        %v469 = vld [vmem:[%s239 + $0x20] sm:$0xff]
        %v470 = vld [vmem:[%s239 + $0x28] sm:$0xff]
        %v471 = vld [vmem:[%s239 + $0x30] sm:$0xff]
        %v472 = vld [vmem:[%s239 + $0x38] sm:$0xff]
        %v473 = vld [vmem:[%s239 + $0x40] sm:$0xff]
        %v474 = vld [vmem:[%s239 + $0x48] sm:$0xff]
        %v475 = vld [vmem:[%s239 + $0x50] sm:$0xff]
        %v476 = vld [vmem:[%s239 + $0x58] sm:$0xff]
        %v477 = vld [vmem:[%s239 + $0x60] sm:$0xff]
        %v478 = vld [vmem:[%s239 + $0x68] sm:$0xff]
        %v479 = vld [vmem:[%s239 + $0x70] sm:$0xff]
        %v480 = vld [vmem:[%s239 + $0x78] sm:$0xff]
        %v545 = vunpack.c.l.b16 %v273
        %v546 = vunpack.c.h.b16 %v273
        %v547 = vunpack.c.l.b16 %v274
        %v548 = vunpack.c.h.b16 %v274
        %v549 = vunpack.c.l.b16 %v275
        %v550 = vunpack.c.h.b16 %v275
        %v551 = vunpack.c.l.b16 %v276
        %v552 = vunpack.c.h.b16 %v276
        %v553 = vunpack.c.l.b16 %v277
        %v554 = vunpack.c.h.b16 %v277
        %v555 = vunpack.c.l.b16 %v278
        %v556 = vunpack.c.h.b16 %v278
        %v557 = vunpack.c.l.b16 %v279
        %v558 = vunpack.c.h.b16 %v279
        %v559 = vunpack.c.l.b16 %v280
        %v560 = vunpack.c.h.b16 %v280
        %v561 = vunpack.c.l.b16 %v281
        %v562 = vunpack.c.h.b16 %v281
        %v563 = vunpack.c.l.b16 %v282
        %v564 = vunpack.c.h.b16 %v282
        %v565 = vunpack.c.l.b16 %v283
        %v566 = vunpack.c.h.b16 %v283
        %v567 = vunpack.c.l.b16 %v284
        %v568 = vunpack.c.h.b16 %v284
        %v569 = vunpack.c.l.b16 %v285
        %v570 = vunpack.c.h.b16 %v285
        %v571 = vunpack.c.l.b16 %v286
        %v572 = vunpack.c.h.b16 %v286
        %v573 = vunpack.c.l.b16 %v287
        %v574 = vunpack.c.h.b16 %v287
        %v575 = vunpack.c.l.b16 %v288
        %v576 = vunpack.c.h.b16 %v288
        %v577 = vunpack.c.l.b16 %v289
        %v578 = vunpack.c.h.b16 %v289
        %v579 = vunpack.c.l.b16 %v290
        %v580 = vunpack.c.h.b16 %v290
        %v581 = vunpack.c.l.b16 %v291
        %v582 = vunpack.c.h.b16 %v291
        %v583 = vunpack.c.l.b16 %v292
        %v584 = vunpack.c.h.b16 %v292
        %v585 = vunpack.c.l.b16 %v293
        %v586 = vunpack.c.h.b16 %v293
        %v587 = vunpack.c.l.b16 %v294
        %v588 = vunpack.c.h.b16 %v294
        %v589 = vunpack.c.l.b16 %v295
        %v590 = vunpack.c.h.b16 %v295
        %v591 = vunpack.c.l.b16 %v296
        %v592 = vunpack.c.h.b16 %v296
        %v593 = vunpack.c.l.b16 %v297
        %v594 = vunpack.c.h.b16 %v297
        %v595 = vunpack.c.l.b16 %v298
        %v596 = vunpack.c.h.b16 %v298
        %v597 = vunpack.c.l.b16 %v299
        %v598 = vunpack.c.h.b16 %v299
        %v599 = vunpack.c.l.b16 %v300
        %v600 = vunpack.c.h.b16 %v300
        %v601 = vunpack.c.l.b16 %v301
        %v602 = vunpack.c.h.b16 %v301
        %v603 = vunpack.c.l.b16 %v302
        %v604 = vunpack.c.h.b16 %v302
        %v605 = vunpack.c.l.b16 %v303
        %v606 = vunpack.c.h.b16 %v303
        %v607 = vunpack.c.l.b16 %v304
        %v608 = vunpack.c.h.b16 %v304
        %v609 = vunpack.c.l.b16 %v305
        %v610 = vunpack.c.h.b16 %v305
        %v611 = vunpack.c.l.b16 %v306
        %v612 = vunpack.c.h.b16 %v306
        %v613 = vunpack.c.l.b16 %v307
        %v614 = vunpack.c.h.b16 %v307
        %v615 = vunpack.c.l.b16 %v308
        %v616 = vunpack.c.h.b16 %v308
        %v617 = vunpack.c.l.b16 %v309
        %v618 = vunpack.c.h.b16 %v309
        %v619 = vunpack.c.l.b16 %v310
        %v620 = vunpack.c.h.b16 %v310
        %v621 = vunpack.c.l.b16 %v311
        %v622 = vunpack.c.h.b16 %v311
        %v623 = vunpack.c.l.b16 %v312
        %v624 = vunpack.c.h.b16 %v312
        %v625 = vunpack.c.l.b16 %v313
        %v626 = vunpack.c.h.b16 %v313
        %v627 = vunpack.c.l.b16 %v314
        %v628 = vunpack.c.h.b16 %v314
        %v629 = vunpack.c.l.b16 %v315
        %v630 = vunpack.c.h.b16 %v315
        %v631 = vunpack.c.l.b16 %v316
        %v632 = vunpack.c.h.b16 %v316
        %v633 = vunpack.c.l.b16 %v317
        %v634 = vunpack.c.h.b16 %v317
        %v635 = vunpack.c.l.b16 %v318
        %v636 = vunpack.c.h.b16 %v318
        %v637 = vunpack.c.l.b16 %v319
        %v638 = vunpack.c.h.b16 %v319
        %v639 = vunpack.c.l.b16 %v320
        %v640 = vunpack.c.h.b16 %v320
        %v641 = vunpack.c.l.b16 %v321
        %v642 = vunpack.c.h.b16 %v321
        %v643 = vunpack.c.l.b16 %v322
        %v644 = vunpack.c.h.b16 %v322
        %v645 = vunpack.c.l.b16 %v323
        %v646 = vunpack.c.h.b16 %v323
        %v647 = vunpack.c.l.b16 %v324
        %v648 = vunpack.c.h.b16 %v324
        %v649 = vunpack.c.l.b16 %v325
        %v650 = vunpack.c.h.b16 %v325
        %v651 = vunpack.c.l.b16 %v326
        %v652 = vunpack.c.h.b16 %v326
        %v653 = vunpack.c.l.b16 %v327
        %v654 = vunpack.c.h.b16 %v327
        %v655 = vunpack.c.l.b16 %v328
        %v656 = vunpack.c.h.b16 %v328
        %v657 = vunpack.c.l.b16 %v329
        %v658 = vunpack.c.h.b16 %v329
        %v659 = vunpack.c.l.b16 %v330
        %v660 = vunpack.c.h.b16 %v330
        %v661 = vunpack.c.l.b16 %v331
        %v662 = vunpack.c.h.b16 %v331
        %v663 = vunpack.c.l.b16 %v332
        %v664 = vunpack.c.h.b16 %v332
        %v665 = vunpack.c.l.b16 %v333
        %v666 = vunpack.c.h.b16 %v333
        %v667 = vunpack.c.l.b16 %v334
        %v668 = vunpack.c.h.b16 %v334
        %v669 = vunpack.c.l.b16 %v335
        %v670 = vunpack.c.h.b16 %v335
        %v671 = vunpack.c.l.b16 %v336
        %v672 = vunpack.c.h.b16 %v336
        %v673 = vpack.c.b16 %v553, %v545
        %v674 = vpack.c.b16 %v554, %v546
        %v675 = vpack.c.b16 %v555, %v547
        %v676 = vpack.c.b16 %v556, %v548
        %v677 = vpack.c.b16 %v557, %v549
        %v678 = vpack.c.b16 %v558, %v550
        %v679 = vpack.c.b16 %v559, %v551
        %v680 = vpack.c.b16 %v560, %v552
        %v681 = vpack.c.b16 %v569, %v561
        %v682 = vpack.c.b16 %v570, %v562
        %v683 = vpack.c.b16 %v571, %v563
        %v684 = vpack.c.b16 %v572, %v564
        %v685 = vpack.c.b16 %v573, %v565
        %v686 = vpack.c.b16 %v574, %v566
        %v687 = vpack.c.b16 %v575, %v567
        %v688 = vpack.c.b16 %v576, %v568
        %v689 = vpack.c.b16 %v585, %v577
        %v690 = vpack.c.b16 %v586, %v578
        %v691 = vpack.c.b16 %v587, %v579
        %v692 = vpack.c.b16 %v588, %v580
        %v693 = vpack.c.b16 %v589, %v581
        %v694 = vpack.c.b16 %v590, %v582
        %v695 = vpack.c.b16 %v591, %v583
        %v696 = vpack.c.b16 %v592, %v584
        %v697 = vpack.c.b16 %v601, %v593
        %v698 = vpack.c.b16 %v602, %v594
        %v699 = vpack.c.b16 %v603, %v595
        %v700 = vpack.c.b16 %v604, %v596
        %v701 = vpack.c.b16 %v605, %v597
        %v702 = vpack.c.b16 %v606, %v598
        %v703 = vpack.c.b16 %v607, %v599
        %v704 = vpack.c.b16 %v608, %v600
        %v705 = vpack.c.b16 %v617, %v609
        %v706 = vpack.c.b16 %v618, %v610
        %v707 = vpack.c.b16 %v619, %v611
        %v708 = vpack.c.b16 %v620, %v612
        %v709 = vpack.c.b16 %v621, %v613
        %v710 = vpack.c.b16 %v622, %v614
        %v711 = vpack.c.b16 %v623, %v615
        %v712 = vpack.c.b16 %v624, %v616
        %v713 = vpack.c.b16 %v633, %v625
        %v714 = vpack.c.b16 %v634, %v626
        %v715 = vpack.c.b16 %v635, %v627
        %v716 = vpack.c.b16 %v636, %v628
        %v717 = vpack.c.b16 %v637, %v629
        %v718 = vpack.c.b16 %v638, %v630
        %v719 = vpack.c.b16 %v639, %v631
        %v720 = vpack.c.b16 %v640, %v632
        %v721 = vpack.c.b16 %v649, %v641
        %v722 = vpack.c.b16 %v650, %v642
        %v723 = vpack.c.b16 %v651, %v643
        %v724 = vpack.c.b16 %v652, %v644
        %v725 = vpack.c.b16 %v653, %v645
        %v726 = vpack.c.b16 %v654, %v646
        %v727 = vpack.c.b16 %v655, %v647
        %v728 = vpack.c.b16 %v656, %v648
        %v729 = vpack.c.b16 %v665, %v657
        %v730 = vpack.c.b16 %v666, %v658
        %v731 = vpack.c.b16 %v667, %v659
        %v732 = vpack.c.b16 %v668, %v660
        %v733 = vpack.c.b16 %v669, %v661
        %v734 = vpack.c.b16 %v670, %v662
        %v735 = vpack.c.b16 %v671, %v663
        %v736 = vpack.c.b16 %v672, %v664
        %v929 = vunpack.c.l.b16 %v337
        %v930 = vunpack.c.l.b16 %v338
        %v931 = vunpack.c.l.b16 %v339
        %v932 = vunpack.c.l.b16 %v340
        %v933 = vunpack.c.l.b16 %v341
        %v934 = vunpack.c.l.b16 %v342
        %v935 = vunpack.c.l.b16 %v343
        %v936 = vunpack.c.l.b16 %v344
        %v937 = vunpack.c.l.b16 %v345
        %v938 = vunpack.c.l.b16 %v346
        %v939 = vunpack.c.l.b16 %v347
        %v940 = vunpack.c.l.b16 %v348
        %v941 = vunpack.c.l.b16 %v349
        %v942 = vunpack.c.l.b16 %v350
        %v943 = vunpack.c.l.b16 %v351
        %v944 = vunpack.c.l.b16 %v352
        %v945 = vunpack.c.l.b16 %v353
        %v946 = vunpack.c.l.b16 %v354
        %v947 = vunpack.c.l.b16 %v355
        %v948 = vunpack.c.l.b16 %v356
        %v949 = vunpack.c.l.b16 %v357
        %v950 = vunpack.c.l.b16 %v358
        %v951 = vunpack.c.l.b16 %v359
        %v952 = vunpack.c.l.b16 %v360
        %v953 = vunpack.c.l.b16 %v361
        %v954 = vunpack.c.l.b16 %v362
        %v955 = vunpack.c.l.b16 %v363
        %v956 = vunpack.c.l.b16 %v364
        %v957 = vunpack.c.l.b16 %v365
        %v958 = vunpack.c.l.b16 %v366
        %v959 = vunpack.c.l.b16 %v367
        %v960 = vunpack.c.l.b16 %v368
        %v961 = vunpack.c.l.b16 %v369
        %v962 = vunpack.c.l.b16 %v370
        %v963 = vunpack.c.l.b16 %v371
        %v964 = vunpack.c.l.b16 %v372
        %v965 = vunpack.c.l.b16 %v373
        %v966 = vunpack.c.l.b16 %v374
        %v967 = vunpack.c.l.b16 %v375
        %v968 = vunpack.c.l.b16 %v376
        %v969 = vunpack.c.l.b16 %v377
        %v970 = vunpack.c.l.b16 %v378
        %v971 = vunpack.c.l.b16 %v379
        %v972 = vunpack.c.l.b16 %v380
        %v973 = vunpack.c.l.b16 %v381
        %v974 = vunpack.c.l.b16 %v382
        %v975 = vunpack.c.l.b16 %v383
        %v976 = vunpack.c.l.b16 %v384
        %v977 = vunpack.c.l.b16 %v385
        %v978 = vunpack.c.l.b16 %v386
        %v979 = vunpack.c.l.b16 %v387
        %v980 = vunpack.c.l.b16 %v388
        %v981 = vunpack.c.l.b16 %v389
        %v982 = vunpack.c.l.b16 %v390
        %v983 = vunpack.c.l.b16 %v391
        %v984 = vunpack.c.l.b16 %v392
        %v985 = vunpack.c.l.b16 %v393
        %v986 = vunpack.c.l.b16 %v394
        %v987 = vunpack.c.l.b16 %v395
        %v988 = vunpack.c.l.b16 %v396
        %v989 = vunpack.c.l.b16 %v397
        %v990 = vunpack.c.l.b16 %v398
        %v991 = vunpack.c.l.b16 %v399
        %v992 = vunpack.c.l.b16 %v400
        %v993 = vunpack.c.l.b16 %v401
        %v994 = vunpack.c.l.b16 %v402
        %v995 = vunpack.c.l.b16 %v403
        %v996 = vunpack.c.l.b16 %v404
        %v997 = vunpack.c.l.b16 %v405
        %v998 = vunpack.c.l.b16 %v406
        %v999 = vunpack.c.l.b16 %v407
        %v1000 = vunpack.c.l.b16 %v408
        %v1001 = vunpack.c.l.b16 %v409
        %v1002 = vunpack.c.l.b16 %v410
        %v1003 = vunpack.c.l.b16 %v411
        %v1004 = vunpack.c.l.b16 %v412
        %v1005 = vunpack.c.l.b16 %v413
        %v1006 = vunpack.c.l.b16 %v414
        %v1007 = vunpack.c.l.b16 %v415
        %v1008 = vunpack.c.l.b16 %v416
        %v1009 = vunpack.c.l.b16 %v417
        %v1010 = vunpack.c.l.b16 %v418
        %v1011 = vunpack.c.l.b16 %v419
        %v1012 = vunpack.c.l.b16 %v420
        %v1013 = vunpack.c.l.b16 %v421
        %v1014 = vunpack.c.l.b16 %v422
        %v1015 = vunpack.c.l.b16 %v423
        %v1016 = vunpack.c.l.b16 %v424
        %v1017 = vunpack.c.l.b16 %v425
        %v1018 = vunpack.c.l.b16 %v426
        %v1019 = vunpack.c.l.b16 %v427
        %v1020 = vunpack.c.l.b16 %v428
        %v1021 = vunpack.c.l.b16 %v429
        %v1022 = vunpack.c.l.b16 %v430
        %v1023 = vunpack.c.l.b16 %v431
        %v1024 = vunpack.c.l.b16 %v432
        %v1025 = vunpack.c.l.b16 %v433
        %v1026 = vunpack.c.l.b16 %v434
        %v1027 = vunpack.c.l.b16 %v435
        %v1028 = vunpack.c.l.b16 %v436
        %v1029 = vunpack.c.l.b16 %v437
        %v1030 = vunpack.c.l.b16 %v438
        %v1031 = vunpack.c.l.b16 %v439
        %v1032 = vunpack.c.l.b16 %v440
        %v1033 = vunpack.c.l.b16 %v441
        %v1034 = vunpack.c.l.b16 %v442
        %v1035 = vunpack.c.l.b16 %v443
        %v1036 = vunpack.c.l.b16 %v444
        %v1037 = vunpack.c.l.b16 %v445
        %v1038 = vunpack.c.l.b16 %v446
        %v1039 = vunpack.c.l.b16 %v447
        %v1040 = vunpack.c.l.b16 %v448
        %v1041 = vunpack.c.l.b16 %v449
        %v1042 = vunpack.c.l.b16 %v450
        %v1043 = vunpack.c.l.b16 %v451
        %v1044 = vunpack.c.l.b16 %v452
        %v1045 = vunpack.c.l.b16 %v453
        %v1046 = vunpack.c.l.b16 %v454
        %v1047 = vunpack.c.l.b16 %v455
        %v1048 = vunpack.c.l.b16 %v456
        %v1049 = vunpack.c.l.b16 %v457
        %v1050 = vunpack.c.l.b16 %v458
        %v1051 = vunpack.c.l.b16 %v459
        %v1052 = vunpack.c.l.b16 %v460
        %v1053 = vunpack.c.l.b16 %v461
        %v1054 = vunpack.c.l.b16 %v462
        %v1055 = vunpack.c.l.b16 %v463
        %v1056 = vunpack.c.l.b16 %v464
        %v1057 = vpack.c.b16 %v930, %v929
        %v1058 = vpack.c.b16 %v932, %v931
        %v1059 = vpack.c.b16 %v934, %v933
        %v1060 = vpack.c.b16 %v936, %v935
        %v1061 = vpack.c.b16 %v938, %v937
        %v1062 = vpack.c.b16 %v940, %v939
        %v1063 = vpack.c.b16 %v942, %v941
        %v1064 = vpack.c.b16 %v944, %v943
        %v1065 = vpack.c.b16 %v946, %v945
        %v1066 = vpack.c.b16 %v948, %v947
        %v1067 = vpack.c.b16 %v950, %v949
        %v1068 = vpack.c.b16 %v952, %v951
        %v1069 = vpack.c.b16 %v954, %v953
        %v1070 = vpack.c.b16 %v956, %v955
        %v1071 = vpack.c.b16 %v958, %v957
        %v1072 = vpack.c.b16 %v960, %v959
        %v1073 = vpack.c.b16 %v962, %v961
        %v1074 = vpack.c.b16 %v964, %v963
        %v1075 = vpack.c.b16 %v966, %v965
        %v1076 = vpack.c.b16 %v968, %v967
        %v1077 = vpack.c.b16 %v970, %v969
        %v1078 = vpack.c.b16 %v972, %v971
        %v1079 = vpack.c.b16 %v974, %v973
        %v1080 = vpack.c.b16 %v976, %v975
        %v1081 = vpack.c.b16 %v978, %v977
        %v1082 = vpack.c.b16 %v980, %v979
        %v1083 = vpack.c.b16 %v982, %v981
        %v1084 = vpack.c.b16 %v984, %v983
        %v1085 = vpack.c.b16 %v986, %v985
        %v1086 = vpack.c.b16 %v988, %v987
        %v1087 = vpack.c.b16 %v990, %v989
        %v1088 = vpack.c.b16 %v992, %v991
        %v1089 = vpack.c.b16 %v994, %v993
        %v1090 = vpack.c.b16 %v996, %v995
        %v1091 = vpack.c.b16 %v998, %v997
        %v1092 = vpack.c.b16 %v1000, %v999
        %v1093 = vpack.c.b16 %v1002, %v1001
        %v1094 = vpack.c.b16 %v1004, %v1003
        %v1095 = vpack.c.b16 %v1006, %v1005
        %v1096 = vpack.c.b16 %v1008, %v1007
        %v1097 = vpack.c.b16 %v1010, %v1009
        %v1098 = vpack.c.b16 %v1012, %v1011
        %v1099 = vpack.c.b16 %v1014, %v1013
        %v1100 = vpack.c.b16 %v1016, %v1015
        %v1101 = vpack.c.b16 %v1018, %v1017
        %v1102 = vpack.c.b16 %v1020, %v1019
        %v1103 = vpack.c.b16 %v1022, %v1021
        %v1104 = vpack.c.b16 %v1024, %v1023
        %v1105 = vpack.c.b16 %v1026, %v1025
        %v1106 = vpack.c.b16 %v1028, %v1027
        %v1107 = vpack.c.b16 %v1030, %v1029
        %v1108 = vpack.c.b16 %v1032, %v1031
        %v1109 = vpack.c.b16 %v1034, %v1033
        %v1110 = vpack.c.b16 %v1036, %v1035
        %v1111 = vpack.c.b16 %v1038, %v1037
        %v1112 = vpack.c.b16 %v1040, %v1039
        %v1113 = vpack.c.b16 %v1042, %v1041
        %v1114 = vpack.c.b16 %v1044, %v1043
        %v1115 = vpack.c.b16 %v1046, %v1045
        %v1116 = vpack.c.b16 %v1048, %v1047
        %v1117 = vpack.c.b16 %v1050, %v1049
        %v1118 = vpack.c.b16 %v1052, %v1051
        %v1119 = vpack.c.b16 %v1054, %v1053
        %v1120 = vpack.c.b16 %v1056, %v1055
        %1185 = vmatprep.subr.bf16.mxu0 0
        %1186 = vmatpush1.bf16.msra.mxu0 %v1057
        %1187 = vmatprep.subr.bf16.mxu0 0
        %1188 = vmatpush1.bf16.msra.mxu0 %v1058
        %1189 = vmatprep.subr.bf16.mxu0 0
        %1190 = vmatpush1.bf16.msra.mxu0 %v1059
        %1191 = vmatprep.subr.bf16.mxu0 0
        %1192 = vmatpush1.bf16.msra.mxu0 %v1060
        %1193 = vmatprep.subr.bf16.mxu0 0
        %1194 = vmatpush1.bf16.msra.mxu0 %v1061
        %1195 = vmatprep.subr.bf16.mxu0 0
        %1196 = vmatpush1.bf16.msra.mxu0 %v1062
        %1197 = vmatprep.subr.bf16.mxu0 0
        %1198 = vmatpush1.bf16.msra.mxu0 %v1063
        %1199 = vmatprep.subr.bf16.mxu0 0
        %1200 = vmatpush1.bf16.msra.mxu0 %v1064
        %1201 = vmatprep.subr.bf16.mxu0 0
        %1202 = vmatpush1.bf16.msra.mxu0 %v1065
        %1203 = vmatprep.subr.bf16.mxu0 0
        %1204 = vmatpush1.bf16.msra.mxu0 %v1066
        %1205 = vmatprep.subr.bf16.mxu0 0
        %1206 = vmatpush1.bf16.msra.mxu0 %v1067
        %1207 = vmatprep.subr.bf16.mxu0 0
        %1208 = vmatpush1.bf16.msra.mxu0 %v1068
        %1209 = vmatprep.subr.bf16.mxu0 0
        %1210 = vmatpush1.bf16.msra.mxu0 %v1069
        %1211 = vmatprep.subr.bf16.mxu0 0
        %1212 = vmatpush1.bf16.msra.mxu0 %v1070
        %1213 = vmatprep.subr.bf16.mxu0 0
        %1214 = vmatpush1.bf16.msra.mxu0 %v1071
        %1215 = vmatprep.subr.bf16.mxu0 0
        %1216 = vmatpush1.bf16.msra.mxu0 %v1072
        %1217 = vmatprep.mubr.bf16.mxu0 %v674
        %1218 = vmatmul.mubr.bf16.gmra.mrb[0].mxu0 %v673
        %v1219 = vpop.f32.mrb[0].mxu0
        %v1220 = vadd.f32 %v465, %v1219
        %v1221 = vpop.f32.mrb[0].mxu0
        %v1222 = vpop.f32.mrb[0].mxu0
        %v1223 = vadd.f32 %v466, %v1222
        %v1224 = vpop.f32.mrb[0].mxu0
        %1225 = vmatprep.mubr.bf16.mxu0 %v682
        %1226 = vmatmul.mubr.bf16.gmra.mrb[0].mxu0 %v681
        %v1227 = vpop.f32.mrb[0].mxu0
        %v1228 = vadd.f32 %v467, %v1227
        %v1229 = vpop.f32.mrb[0].mxu0
        %v1230 = vpop.f32.mrb[0].mxu0
        %v1231 = vadd.f32 %v468, %v1230
        %v1232 = vpop.f32.mrb[0].mxu0
        %1233 = vmatprep.mubr.bf16.mxu0 %v690
        %1234 = vmatmul.mubr.bf16.gmra.mrb[0].mxu0 %v689
        %v1235 = vpop.f32.mrb[0].mxu0
        %v1236 = vadd.f32 %v469, %v1235
        %v1237 = vpop.f32.mrb[0].mxu0
        %v1238 = vpop.f32.mrb[0].mxu0
        %v1239 = vadd.f32 %v470, %v1238
        %v1240 = vpop.f32.mrb[0].mxu0
        %1241 = vmatprep.mubr.bf16.mxu0 %v698
        %1242 = vmatmul.mubr.bf16.gmra.mrb[0].mxu0 %v697
        %v1243 = vpop.f32.mrb[0].mxu0
        %v1244 = vadd.f32 %v471, %v1243
        %v1245 = vpop.f32.mrb[0].mxu0
        %v1246 = vpop.f32.mrb[0].mxu0
        %v1247 = vadd.f32 %v472, %v1246
        %v1248 = vpop.f32.mrb[0].mxu0
        %1249 = vmatprep.mubr.bf16.mxu0 %v706
        %1250 = vmatmul.mubr.bf16.gmra.mrb[0].mxu0 %v705
        %v1251 = vpop.f32.mrb[0].mxu0
        %v1252 = vadd.f32 %v473, %v1251
        %v1253 = vpop.f32.mrb[0].mxu0
        %v1254 = vpop.f32.mrb[0].mxu0
        %v1255 = vadd.f32 %v474, %v1254
        %v1256 = vpop.f32.mrb[0].mxu0
        %1257 = vmatprep.mubr.bf16.mxu0 %v714
        %1258 = vmatmul.mubr.bf16.gmra.mrb[0].mxu0 %v713
        %v1259 = vpop.f32.mrb[0].mxu0
        %v1260 = vadd.f32 %v475, %v1259
        %v1261 = vpop.f32.mrb[0].mxu0
        %v1262 = vpop.f32.mrb[0].mxu0
        %v1263 = vadd.f32 %v476, %v1262
        %v1264 = vpop.f32.mrb[0].mxu0
        %1265 = vmatprep.mubr.bf16.mxu0 %v722
        %1266 = vmatmul.mubr.bf16.gmra.mrb[0].mxu0 %v721
        %v1267 = vpop.f32.mrb[0].mxu0
        %v1268 = vadd.f32 %v477, %v1267
        %v1269 = vpop.f32.mrb[0].mxu0
        %v1270 = vpop.f32.mrb[0].mxu0
        %v1271 = vadd.f32 %v478, %v1270
        %v1272 = vpop.f32.mrb[0].mxu0
        %1273 = vmatprep.mubr.bf16.mxu0 %v730
        %1274 = vmatmul.mubr.bf16.gmra.mrb[0].mxu0 %v729
        %v1275 = vpop.f32.mrb[0].mxu0
        %v1276 = vadd.f32 %v479, %v1275
        %v1277 = vpop.f32.mrb[0].mxu0
        %v1278 = vpop.f32.mrb[0].mxu0
        %v1279 = vadd.f32 %v480, %v1278
        %v1280 = vpop.f32.mrb[0].mxu0
        %1281 = vdwg.mxu0
        %1282 = vmatprep.subr.bf16.mxu0 0
        %1283 = vmatpush1.bf16.msra.mxu0 %v1073
        %1284 = vmatprep.subr.bf16.mxu0 0
        %1285 = vmatpush1.bf16.msra.mxu0 %v1074
        %1286 = vmatprep.subr.bf16.mxu0 0
        %1287 = vmatpush1.bf16.msra.mxu0 %v1075
        %1288 = vmatprep.subr.bf16.mxu0 0
        %1289 = vmatpush1.bf16.msra.mxu0 %v1076
        %1290 = vmatprep.subr.bf16.mxu0 0
        %1291 = vmatpush1.bf16.msra.mxu0 %v1077
        %1292 = vmatprep.subr.bf16.mxu0 0
        %1293 = vmatpush1.bf16.msra.mxu0 %v1078
        %1294 = vmatprep.subr.bf16.mxu0 0
        %1295 = vmatpush1.bf16.msra.mxu0 %v1079
        %1296 = vmatprep.subr.bf16.mxu0 0
        %1297 = vmatpush1.bf16.msra.mxu0 %v1080
        %1298 = vmatprep.subr.bf16.mxu0 0
        %1299 = vmatpush1.bf16.msra.mxu0 %v1081
        %1300 = vmatprep.subr.bf16.mxu0 0
        %1301 = vmatpush1.bf16.msra.mxu0 %v1082
        %1302 = vmatprep.subr.bf16.mxu0 0
        %1303 = vmatpush1.bf16.msra.mxu0 %v1083
        %1304 = vmatprep.subr.bf16.mxu0 0
        %1305 = vmatpush1.bf16.msra.mxu0 %v1084
        %1306 = vmatprep.subr.bf16.mxu0 0
        %1307 = vmatpush1.bf16.msra.mxu0 %v1085
        %1308 = vmatprep.subr.bf16.mxu0 0
        %1309 = vmatpush1.bf16.msra.mxu0 %v1086
        %1310 = vmatprep.subr.bf16.mxu0 0
        %1311 = vmatpush1.bf16.msra.mxu0 %v1087
        %1312 = vmatprep.subr.bf16.mxu0 0
        %1313 = vmatpush1.bf16.msra.mxu0 %v1088
        %1314 = vmatprep.mubr.bf16.mxu0 %v676
        %1315 = vmatmul.mubr.bf16.gmra.mrb[0].mxu0 %v675
        %v1316 = vpop.f32.mrb[0].mxu0
        %v1317 = vadd.f32 %v1220, %v1316
        %v1318 = vpop.f32.mrb[0].mxu0
        %v1319 = vpop.f32.mrb[0].mxu0
        %v1320 = vadd.f32 %v1223, %v1319
        %v1321 = vpop.f32.mrb[0].mxu0
        %1322 = vmatprep.mubr.bf16.mxu0 %v684
        %1323 = vmatmul.mubr.bf16.gmra.mrb[0].mxu0 %v683
        %v1324 = vpop.f32.mrb[0].mxu0
        %v1325 = vadd.f32 %v1228, %v1324
        %v1326 = vpop.f32.mrb[0].mxu0
        %v1327 = vpop.f32.mrb[0].mxu0
        %v1328 = vadd.f32 %v1231, %v1327
        %v1329 = vpop.f32.mrb[0].mxu0
        %1330 = vmatprep.mubr.bf16.mxu0 %v692
        %1331 = vmatmul.mubr.bf16.gmra.mrb[0].mxu0 %v691
        %v1332 = vpop.f32.mrb[0].mxu0
        %v1333 = vadd.f32 %v1236, %v1332
        %v1334 = vpop.f32.mrb[0].mxu0
        %v1335 = vpop.f32.mrb[0].mxu0
        %v1336 = vadd.f32 %v1239, %v1335
        %v1337 = vpop.f32.mrb[0].mxu0
        %1338 = vmatprep.mubr.bf16.mxu0 %v700
        %1339 = vmatmul.mubr.bf16.gmra.mrb[0].mxu0 %v699
        %v1340 = vpop.f32.mrb[0].mxu0
        %v1341 = vadd.f32 %v1244, %v1340
        %v1342 = vpop.f32.mrb[0].mxu0
        %v1343 = vpop.f32.mrb[0].mxu0
        %v1344 = vadd.f32 %v1247, %v1343
        %v1345 = vpop.f32.mrb[0].mxu0
        %1346 = vmatprep.mubr.bf16.mxu0 %v708
        %1347 = vmatmul.mubr.bf16.gmra.mrb[0].mxu0 %v707
        %v1348 = vpop.f32.mrb[0].mxu0
        %v1349 = vadd.f32 %v1252, %v1348
        %v1350 = vpop.f32.mrb[0].mxu0
        %v1351 = vpop.f32.mrb[0].mxu0
        %v1352 = vadd.f32 %v1255, %v1351
        %v1353 = vpop.f32.mrb[0].mxu0
        %1354 = vmatprep.mubr.bf16.mxu0 %v716
        %1355 = vmatmul.mubr.bf16.gmra.mrb[0].mxu0 %v715
        %v1356 = vpop.f32.mrb[0].mxu0
        %v1357 = vadd.f32 %v1260, %v1356
        %v1358 = vpop.f32.mrb[0].mxu0
        %v1359 = vpop.f32.mrb[0].mxu0
        %v1360 = vadd.f32 %v1263, %v1359
        %v1361 = vpop.f32.mrb[0].mxu0
        %1362 = vmatprep.mubr.bf16.mxu0 %v724
        %1363 = vmatmul.mubr.bf16.gmra.mrb[0].mxu0 %v723
        %v1364 = vpop.f32.mrb[0].mxu0
        %v1365 = vadd.f32 %v1268, %v1364
        %v1366 = vpop.f32.mrb[0].mxu0
        %v1367 = vpop.f32.mrb[0].mxu0
        %v1368 = vadd.f32 %v1271, %v1367
        %v1369 = vpop.f32.mrb[0].mxu0
        %1370 = vmatprep.mubr.bf16.mxu0 %v732
        %1371 = vmatmul.mubr.bf16.gmra.mrb[0].mxu0 %v731
        %v1372 = vpop.f32.mrb[0].mxu0
        %v1373 = vadd.f32 %v1276, %v1372
        %v1374 = vpop.f32.mrb[0].mxu0
        %v1375 = vpop.f32.mrb[0].mxu0
        %v1376 = vadd.f32 %v1279, %v1375
        %v1377 = vpop.f32.mrb[0].mxu0
        %1378 = vdwg.mxu0
        %1379 = vmatprep.subr.bf16.mxu0 0
        %1380 = vmatpush1.bf16.msra.mxu0 %v1089
        %1381 = vmatprep.subr.bf16.mxu0 0
        %1382 = vmatpush1.bf16.msra.mxu0 %v1090
        %1383 = vmatprep.subr.bf16.mxu0 0
        %1384 = vmatpush1.bf16.msra.mxu0 %v1091
        %1385 = vmatprep.subr.bf16.mxu0 0
        %1386 = vmatpush1.bf16.msra.mxu0 %v1092
        %1387 = vmatprep.subr.bf16.mxu0 0
        %1388 = vmatpush1.bf16.msra.mxu0 %v1093
        %1389 = vmatprep.subr.bf16.mxu0 0
        %1390 = vmatpush1.bf16.msra.mxu0 %v1094
        %1391 = vmatprep.subr.bf16.mxu0 0
        %1392 = vmatpush1.bf16.msra.mxu0 %v1095
        %1393 = vmatprep.subr.bf16.mxu0 0
        %1394 = vmatpush1.bf16.msra.mxu0 %v1096
        %1395 = vmatprep.subr.bf16.mxu0 0
        %1396 = vmatpush1.bf16.msra.mxu0 %v1097
        %1397 = vmatprep.subr.bf16.mxu0 0
        %1398 = vmatpush1.bf16.msra.mxu0 %v1098
        %1399 = vmatprep.subr.bf16.mxu0 0
        %1400 = vmatpush1.bf16.msra.mxu0 %v1099
        %1401 = vmatprep.subr.bf16.mxu0 0
        %1402 = vmatpush1.bf16.msra.mxu0 %v1100
        %1403 = vmatprep.subr.bf16.mxu0 0
        %1404 = vmatpush1.bf16.msra.mxu0 %v1101
        %1405 = vmatprep.subr.bf16.mxu0 0
        %1406 = vmatpush1.bf16.msra.mxu0 %v1102
        %1407 = vmatprep.subr.bf16.mxu0 0
        %1408 = vmatpush1.bf16.msra.mxu0 %v1103
        %1409 = vmatprep.subr.bf16.mxu0 0
        %1410 = vmatpush1.bf16.msra.mxu0 %v1104
        %1411 = vmatprep.mubr.bf16.mxu0 %v678
        %1412 = vmatmul.mubr.bf16.gmra.mrb[0].mxu0 %v677
        %v1413 = vpop.f32.mrb[0].mxu0
        %v1414 = vadd.f32 %v1317, %v1413
        %v1415 = vpop.f32.mrb[0].mxu0
        %v1416 = vpop.f32.mrb[0].mxu0
        %v1417 = vadd.f32 %v1320, %v1416
        %v1418 = vpop.f32.mrb[0].mxu0
        %1419 = vmatprep.mubr.bf16.mxu0 %v686
        %1420 = vmatmul.mubr.bf16.gmra.mrb[0].mxu0 %v685
        %v1421 = vpop.f32.mrb[0].mxu0
        %v1422 = vadd.f32 %v1325, %v1421
        %v1423 = vpop.f32.mrb[0].mxu0
        %v1424 = vpop.f32.mrb[0].mxu0
        %v1425 = vadd.f32 %v1328, %v1424
        %v1426 = vpop.f32.mrb[0].mxu0
        %1427 = vmatprep.mubr.bf16.mxu0 %v694
        %1428 = vmatmul.mubr.bf16.gmra.mrb[0].mxu0 %v693
        %v1429 = vpop.f32.mrb[0].mxu0
        %v1430 = vadd.f32 %v1333, %v1429
        %v1431 = vpop.f32.mrb[0].mxu0
        %v1432 = vpop.f32.mrb[0].mxu0
        %v1433 = vadd.f32 %v1336, %v1432
        %v1434 = vpop.f32.mrb[0].mxu0
        %1435 = vmatprep.mubr.bf16.mxu0 %v702
        %1436 = vmatmul.mubr.bf16.gmra.mrb[0].mxu0 %v701
        %v1437 = vpop.f32.mrb[0].mxu0
        %v1438 = vadd.f32 %v1341, %v1437
        %v1439 = vpop.f32.mrb[0].mxu0
        %v1440 = vpop.f32.mrb[0].mxu0
        %v1441 = vadd.f32 %v1344, %v1440
        %v1442 = vpop.f32.mrb[0].mxu0
        %1443 = vmatprep.mubr.bf16.mxu0 %v710
        %1444 = vmatmul.mubr.bf16.gmra.mrb[0].mxu0 %v709
        %v1445 = vpop.f32.mrb[0].mxu0
        %v1446 = vadd.f32 %v1349, %v1445
        %v1447 = vpop.f32.mrb[0].mxu0
        %v1448 = vpop.f32.mrb[0].mxu0
        %v1449 = vadd.f32 %v1352, %v1448
        %v1450 = vpop.f32.mrb[0].mxu0
        %1451 = vmatprep.mubr.bf16.mxu0 %v718
        %1452 = vmatmul.mubr.bf16.gmra.mrb[0].mxu0 %v717
        %v1453 = vpop.f32.mrb[0].mxu0
        %v1454 = vadd.f32 %v1357, %v1453
        %v1455 = vpop.f32.mrb[0].mxu0
        %v1456 = vpop.f32.mrb[0].mxu0
        %v1457 = vadd.f32 %v1360, %v1456
        %v1458 = vpop.f32.mrb[0].mxu0
        %1459 = vmatprep.mubr.bf16.mxu0 %v726
        %1460 = vmatmul.mubr.bf16.gmra.mrb[0].mxu0 %v725
        %v1461 = vpop.f32.mrb[0].mxu0
        %v1462 = vadd.f32 %v1365, %v1461
        %v1463 = vpop.f32.mrb[0].mxu0
        %v1464 = vpop.f32.mrb[0].mxu0
        %v1465 = vadd.f32 %v1368, %v1464
        %v1466 = vpop.f32.mrb[0].mxu0
        %1467 = vmatprep.mubr.bf16.mxu0 %v734
        %1468 = vmatmul.mubr.bf16.gmra.mrb[0].mxu0 %v733
        %v1469 = vpop.f32.mrb[0].mxu0
        %v1470 = vadd.f32 %v1373, %v1469
        %v1471 = vpop.f32.mrb[0].mxu0
        %v1472 = vpop.f32.mrb[0].mxu0
        %v1473 = vadd.f32 %v1376, %v1472
        %v1474 = vpop.f32.mrb[0].mxu0
        %1475 = vdwg.mxu0
        %1476 = vmatprep.subr.bf16.mxu0 0
        %1477 = vmatpush1.bf16.msra.mxu0 %v1105
        %1478 = vmatprep.subr.bf16.mxu0 0
        %1479 = vmatpush1.bf16.msra.mxu0 %v1106
        %1480 = vmatprep.subr.bf16.mxu0 0
        %1481 = vmatpush1.bf16.msra.mxu0 %v1107
        %1482 = vmatprep.subr.bf16.mxu0 0
        %1483 = vmatpush1.bf16.msra.mxu0 %v1108
        %1484 = vmatprep.subr.bf16.mxu0 0
        %1485 = vmatpush1.bf16.msra.mxu0 %v1109
        %1486 = vmatprep.subr.bf16.mxu0 0
        %1487 = vmatpush1.bf16.msra.mxu0 %v1110
        %1488 = vmatprep.subr.bf16.mxu0 0
        %1489 = vmatpush1.bf16.msra.mxu0 %v1111
        %1490 = vmatprep.subr.bf16.mxu0 0
        %1491 = vmatpush1.bf16.msra.mxu0 %v1112
        %1492 = vmatprep.subr.bf16.mxu0 0
        %1493 = vmatpush1.bf16.msra.mxu0 %v1113
        %1494 = vmatprep.subr.bf16.mxu0 0
        %1495 = vmatpush1.bf16.msra.mxu0 %v1114
        %1496 = vmatprep.subr.bf16.mxu0 0
        %1497 = vmatpush1.bf16.msra.mxu0 %v1115
        %1498 = vmatprep.subr.bf16.mxu0 0
        %1499 = vmatpush1.bf16.msra.mxu0 %v1116
        %1500 = vmatprep.subr.bf16.mxu0 0
        %1501 = vmatpush1.bf16.msra.mxu0 %v1117
        %1502 = vmatprep.subr.bf16.mxu0 0
        %1503 = vmatpush1.bf16.msra.mxu0 %v1118
        %1504 = vmatprep.subr.bf16.mxu0 0
        %1505 = vmatpush1.bf16.msra.mxu0 %v1119
        %1506 = vmatprep.subr.bf16.mxu0 0
        %1507 = vmatpush1.bf16.msra.mxu0 %v1120
        %1508 = vmatprep.mubr.bf16.mxu0 %v680
        %1509 = vmatmul.mubr.bf16.gmra.mrb[0].mxu0 %v679
        %v1510 = vpop.f32.mrb[0].mxu0
        %v1511 = vadd.f32 %v1414, %v1510
        %v1512 = vpop.f32.mrb[0].mxu0
        %v1513 = vpop.f32.mrb[0].mxu0
        %v1514 = vadd.f32 %v1417, %v1513
        %v1515 = vpop.f32.mrb[0].mxu0
        %1516 = vmatprep.mubr.bf16.mxu0 %v688
        %1517 = vmatmul.mubr.bf16.gmra.mrb[0].mxu0 %v687
        %v1518 = vpop.f32.mrb[0].mxu0
        %v1519 = vadd.f32 %v1422, %v1518
        %v1520 = vpop.f32.mrb[0].mxu0
        %v1521 = vpop.f32.mrb[0].mxu0
        %v1522 = vadd.f32 %v1425, %v1521
        %v1523 = vpop.f32.mrb[0].mxu0
        %1524 = vmatprep.mubr.bf16.mxu0 %v696
        %1525 = vmatmul.mubr.bf16.gmra.mrb[0].mxu0 %v695
        %v1526 = vpop.f32.mrb[0].mxu0
        %v1527 = vadd.f32 %v1430, %v1526
        %v1528 = vpop.f32.mrb[0].mxu0
        %v1529 = vpop.f32.mrb[0].mxu0
        %v1530 = vadd.f32 %v1433, %v1529
        %v1531 = vpop.f32.mrb[0].mxu0
        %1532 = vmatprep.mubr.bf16.mxu0 %v704
        %1533 = vmatmul.mubr.bf16.gmra.mrb[0].mxu0 %v703
        %v1534 = vpop.f32.mrb[0].mxu0
        %v1535 = vadd.f32 %v1438, %v1534
        %v1536 = vpop.f32.mrb[0].mxu0
        %v1537 = vpop.f32.mrb[0].mxu0
        %v1538 = vadd.f32 %v1441, %v1537
        %v1539 = vpop.f32.mrb[0].mxu0
        %1540 = vmatprep.mubr.bf16.mxu0 %v712
        %1541 = vmatmul.mubr.bf16.gmra.mrb[0].mxu0 %v711
        %v1542 = vpop.f32.mrb[0].mxu0
        %v1543 = vadd.f32 %v1446, %v1542
        %v1544 = vpop.f32.mrb[0].mxu0
        %v1545 = vpop.f32.mrb[0].mxu0
        %v1546 = vadd.f32 %v1449, %v1545
        %v1547 = vpop.f32.mrb[0].mxu0
        %1548 = vmatprep.mubr.bf16.mxu0 %v720
        %1549 = vmatmul.mubr.bf16.gmra.mrb[0].mxu0 %v719
        %v1550 = vpop.f32.mrb[0].mxu0
        %v1551 = vadd.f32 %v1454, %v1550
        %v1552 = vpop.f32.mrb[0].mxu0
        %v1553 = vpop.f32.mrb[0].mxu0
        %v1554 = vadd.f32 %v1457, %v1553
        %v1555 = vpop.f32.mrb[0].mxu0
        %1556 = vmatprep.mubr.bf16.mxu0 %v728
        %1557 = vmatmul.mubr.bf16.gmra.mrb[0].mxu0 %v727
        %v1558 = vpop.f32.mrb[0].mxu0
        %v1559 = vadd.f32 %v1462, %v1558
        %v1560 = vpop.f32.mrb[0].mxu0
        %v1561 = vpop.f32.mrb[0].mxu0
        %v1562 = vadd.f32 %v1465, %v1561
        %v1563 = vpop.f32.mrb[0].mxu0
        %1564 = vmatprep.mubr.bf16.mxu0 %v736
        %1565 = vmatmul.mubr.bf16.gmra.mrb[0].mxu0 %v735
        %v1566 = vpop.f32.mrb[0].mxu0
        %v1567 = vadd.f32 %v1470, %v1566
        %v1568 = vpop.f32.mrb[0].mxu0
        %v1569 = vpop.f32.mrb[0].mxu0
        %v1570 = vadd.f32 %v1473, %v1569
        %v1571 = vpop.f32.mrb[0].mxu0
        %1572 = vdwg.mxu0
        %v1573 = vld [vmem:[%s3] sm:$0x1]
        %v1575 = vlaneseq
        %v1576 = vshrl.u32 %v1575, 7
        %v1577 = vsub.s32 0, %v1576
        %v1578 = vrot.slane %v1573, %v1577
        %v1580 = vadd.f32 %v1511, %v1578
        %v1581 = vadd.f32 %v1514, %v1578
        %v1582 = vadd.f32 %v1519, %v1578
        %v1583 = vadd.f32 %v1522, %v1578
        %v1584 = vadd.f32 %v1527, %v1578
        %v1585 = vadd.f32 %v1530, %v1578
        %v1586 = vadd.f32 %v1535, %v1578
        %v1587 = vadd.f32 %v1538, %v1578
        %v1588 = vadd.f32 %v1543, %v1578
        %v1589 = vadd.f32 %v1546, %v1578
        %v1590 = vadd.f32 %v1551, %v1578
        %v1591 = vadd.f32 %v1554, %v1578
        %v1592 = vadd.f32 %v1559, %v1578
        %v1593 = vadd.f32 %v1562, %v1578
        %v1594 = vadd.f32 %v1567, %v1578
        %v1595 = vadd.f32 %v1570, %v1578
        %v1596 = vmax.f32 %v1580, 0.0
        %v1597 = vmax.f32 %v1581, 0.0
        %v1598 = vmax.f32 %v1582, 0.0
        %v1599 = vmax.f32 %v1583, 0.0
        %v1600 = vmax.f32 %v1584, 0.0
        %v1601 = vmax.f32 %v1585, 0.0
        %v1602 = vmax.f32 %v1586, 0.0
        %v1603 = vmax.f32 %v1587, 0.0
        %v1604 = vmax.f32 %v1588, 0.0
        %v1605 = vmax.f32 %v1589, 0.0
        %v1606 = vmax.f32 %v1590, 0.0
        %v1607 = vmax.f32 %v1591, 0.0
        %v1608 = vmax.f32 %v1592, 0.0
        %v1609 = vmax.f32 %v1593, 0.0
        %v1610 = vmax.f32 %v1594, 0.0
        %v1611 = vmax.f32 %v1595, 0.0
        %1612 = vst [vmem:[%s268] sm:$0xff] %v1596
        %1613 = vst [vmem:[%s268 + $0x8] sm:$0xff] %v1597
        %1614 = vst [vmem:[%s268 + $0x10] sm:$0xff] %v1598
        %1615 = vst [vmem:[%s268 + $0x18] sm:$0xff] %v1599
        %1616 = vst [vmem:[%s268 + $0x20] sm:$0xff] %v1600
        %1617 = vst [vmem:[%s268 + $0x28] sm:$0xff] %v1601
        %1618 = vst [vmem:[%s268 + $0x30] sm:$0xff] %v1602
        %1619 = vst [vmem:[%s268 + $0x38] sm:$0xff] %v1603
        %1620 = vst [vmem:[%s268 + $0x40] sm:$0xff] %v1604
        %1621 = vst [vmem:[%s268 + $0x48] sm:$0xff] %v1605
        %1622 = vst [vmem:[%s268 + $0x50] sm:$0xff] %v1606
        %1623 = vst [vmem:[%s268 + $0x58] sm:$0xff] %v1607
        %1624 = vst [vmem:[%s268 + $0x60] sm:$0xff] %v1608
        %1625 = vst [vmem:[%s268 + $0x68] sm:$0xff] %v1609
        %1626 = vst [vmem:[%s268 + $0x70] sm:$0xff] %v1610
        %1627 = vst [vmem:[%s268 + $0x78] sm:$0xff] %v1611
        %s1628 = sand.u32 %s124, 1
        %s1629 = scalar_lea.sflag [#allocation4], %s1628
        %s1630 = sand.u32 %s124, 1
        %s1631 = smul.addr %s1630, 128
        %s1632 = scalar_lea.vmem [#allocation8], %s1631
        // Predicated region
        $region49: #{tpu_custom_call.1} parent=35 // pred_check
          %p1633 = pneg %p134
        $region50: #{tpu_custom_call.1} parent=35 // pred_check_branch
          %1635 = sbr.rel (%p1633) target = $region52
        $region51: #{tpu_custom_call.1} parent=35 // pred_region
          %s1636 = smul.u32 16, %s22
          %s1638 = ssub.s32 2048, 2048
          %1639 = vsyncadd %s1629, %s1638
          %s1640 = smul.addr %s1636, 128
          %s1641 = scalar_lea.hbm %s4, %s1640
          %s1642 = sshll.u32 %s1632, 4
          %s1643 = int_to_ptr.vmem [resolvable:$true] %s1642
          %1648 = dma.vmem_to_hbm [thread:$0]  %s1643, 2048, %s1641, %s1629, 128, 128, 8
        $region52: #{tpu_custom_call.1} parent=35 // pred_fallthru
          _
      $region36: #{tpu_custom_call.1} parent=5 // pred_fallthru
        _
      %p1649 = scmp.le.s32.totalorder 2, %s17
      // Predicated region
      $region53: #{tpu_custom_call.1} parent=5 // pred_check
        %p1650 = pneg %p1649
      $region54: #{tpu_custom_call.1} parent=5 // pred_check_branch
        %1652 = sbr.rel (%p1650) target = $region56
      $region55: #{tpu_custom_call.1} parent=5 // pred_region
        %s1653 = ssub.s32 %s17, 2
        // Predicated region
        $region57: #{tpu_custom_call.1} parent=55 // pred_check
          %p1654 = pneg %p140
        $region58: #{tpu_custom_call.1} parent=55 // pred_check_branch
          %1656 = sbr.rel (%p1654) target = $region60
        $region59: #{tpu_custom_call.1} parent=55 // pred_region
          %s1657 = sand.u32 %s125, 1
          %s1658 = scalar_lea.sflag [#allocation4], %s1657
          %s1659 = sand.u32 %s125, 1
          %s1660 = smul.addr %s1659, 128
          %s1661 = scalar_lea.vmem [#allocation8], %s1660
          %1662 = dma.done %s1658, 2048
        $region60: #{tpu_custom_call.1} parent=55 // pred_fallthru
          _
      $region56: #{tpu_custom_call.1} parent=5 // pred_fallthru
        _
    $region6: #{tpu_custom_call.1} parent=1 // loop_footer
      %s21 = sadd.s32 1, %s17
    $region7: #{tpu_custom_call.1} parent=1 // loop_footer_branch
      %16 = sbr.rel target = $region3
    $region8: #{tpu_custom_call.1} parent=1 // loop_exit
      _
    %1663 = vsyncpa [#allocation3], 1
    %s1664 = scalar_lea.sflag [#allocation3], 1
    %1665 = vsyncpa %s1664, 1
    %1666 = vsyncpa [#allocation6], 1
    %1667 = vsyncpa [#allocation4], 1
    %s1668 = scalar_lea.sflag [#allocation4], 1
    %1669 = vsyncpa %s1668, 1

</llo_original>
